<compile_context>
chip_gen: v5e
topology: v5e:2x2
jax: 0.10.0
libtpu: 0.0.40
codegen_flags: <defaults>
</compile_context>

<pallas_src>
import jax
import jax.numpy as jnp
from jax import lax
from jax.experimental import pallas as pl
from jax.experimental.pallas import tpu as pltpu

BN_EPS = 1e-5
# Stay within scoped VMEM on every listed generation (v7x physical is 64 MiB).
_VMEM_LIMIT = 48 * 1024 * 1024


def _fused_mlp_kernel(x_ref, w1_ref, gamma_ref, beta_ref, w2_ref, b2_ref, o_ref):
    """One hidden-feature tile: Linear1 (full-K) + BN + ReLU + Linear2 partial.

    The (N, out_dim) f32 output ref is resident across the hidden-tile grid
    and used directly as the layer2 accumulator.
    """
    i = pl.program_id(0)
    last = pl.num_programs(0) - 1

    # ---- layer1 tile: x @ W1[:, tile]  (bf16 x bf16 -> f32 on the MXU) ----
    h = jnp.dot(x_ref[...], w1_ref[...], preferred_element_type=jnp.float32)

    # ---- BatchNorm1d (training mode, biased batch variance) + ReLU, f32 ----
    n_rows = h.shape[0]
    inv_n = 1.0 / n_rows
    mean = jnp.sum(h, axis=0, keepdims=True) * inv_n
    centered = h - mean
    var = jnp.sum(centered * centered, axis=0, keepdims=True) * inv_n
    scale = gamma_ref[...] * lax.rsqrt(var + BN_EPS)          # fold gamma into rsqrt
    h_bn = centered * scale + beta_ref[...]
    h_relu = jnp.maximum(h_bn, 0.0).astype(jnp.bfloat16)

    # ---- layer2 partial: relu(h) @ W2[tile, :], accumulate into o_ref ----
    partial = jnp.dot(h_relu, w2_ref[...], preferred_element_type=jnp.float32)

    @pl.when(i == 0)
    def _():
        o_ref[...] = partial

    @pl.when(i > 0)
    def _():
        o_ref[...] += partial

    @pl.when(i == last)
    def _():
        o_ref[...] += b2_ref[...]


def _tile(dim, pref):
    """Largest 128-multiple divisor of `dim` that is <= pref, else dim itself."""
    if dim <= pref:
        return dim
    if dim % pref == 0:
        return pref
    for t in range(pref - (pref % 128), 0, -128):
        if dim % t == 0:
            return t
    return dim


def _estimate_vmem_bytes(n, in_dim, hidden, out_dim, tn_h):
    """Conservative VMEM estimate for the fused kernel (double-buffered DMAs)."""
    x_b = n * in_dim * 2 * 2                 # bf16, x2 buffers
    w1_b = in_dim * tn_h * 2 * 2
    w2_b = tn_h * out_dim * 2 * 2
    par_b = (2 * tn_h + out_dim) * 4 * 2     # gamma, beta, b2 (f32)
    out_b = n * out_dim * 4 * 2              # f32 resident output
    tmp_b = n * tn_h * 4 * 2                 # f32 intermediates (h, centered)
    return x_b + w1_b + w2_b + par_b + out_b + tmp_b


def prediction_mlp_forward(x, w1, b1, gamma, beta, w2, b2, *, tn_h=256):
    """x: (N, in_dim); w1: (in_dim, hidden); w2: (hidden, out_dim).

    Training-mode BatchNorm1d forward (batch statistics).  b1 is accepted for
    API parity but is mathematically cancelled by the BN mean subtraction
    (valid ONLY for the batch-statistics path implemented here).
    """
    del b1  # exactly cancelled by the per-feature batch-mean subtraction

    n, in_dim = x.shape
    hidden = w1.shape[1]
    out_dim = w2.shape[1]

    tn_h = _tile(hidden, tn_h)

    est = _estimate_vmem_bytes(n, in_dim, hidden, out_dim, tn_h)
    if est > _VMEM_LIMIT:
        # TODO(synk): for very large per-device batch (v7x 64 MiB VMEM), switch
        # to a two-pass BN (stats kernel + normalize kernel, batch-tiled).
        raise ValueError(
            f"fused prediction_MLP kernel needs ~{est >> 20} MiB VMEM "
            f"(> {_VMEM_LIMIT >> 20} MiB limit); reduce batch or tn_h")

    # bf16 matmul operands (MXU-native); BN / bias params stay f32.
    x_bf = x.astype(jnp.bfloat16)
    w1_bf = w1.astype(jnp.bfloat16)
    w2_bf = w2.astype(jnp.bfloat16)
    gamma_2d = gamma.reshape(1, hidden).astype(jnp.float32)
    beta_2d = beta.reshape(1, hidden).astype(jnp.float32)
    b2_2d = b2.reshape(1, out_dim).astype(jnp.float32)

    n_tiles = hidden // tn_h

    out = pl.pallas_call(
        _fused_mlp_kernel,
        out_shape=jax.ShapeDtypeStruct((n, out_dim), jnp.float32),
        grid_spec=pltpu.PrefetchScalarGridSpec(
            num_scalar_prefetch=0,
            grid=(n_tiles,),
            in_specs=[
                pl.BlockSpec((n, in_dim), lambda i: (0, 0)),     # x (fetched once)
                pl.BlockSpec((in_dim, tn_h), lambda i: (0, i)),  # w1 column slab
                pl.BlockSpec((1, tn_h), lambda i: (0, i)),       # gamma
                pl.BlockSpec((1, tn_h), lambda i: (0, i)),       # beta
                pl.BlockSpec((tn_h, out_dim), lambda i: (i, 0)),  # w2 row slab
                pl.BlockSpec((1, out_dim), lambda i: (0, 0)),    # b2
            ],
            # Resident across the hidden-tile grid: doubles as the accumulator.
            out_specs=pl.BlockSpec((n, out_dim), lambda i: (0, 0)),
        ),
        compiler_params=pltpu.CompilerParams(
            dimension_semantics=("arbitrary",),
            vmem_limit_bytes=_VMEM_LIMIT),
        cost_estimate=pl.CostEstimate(
            flops=2 * n * in_dim * hidden + 2 * n * hidden * out_dim,
            transcendentals=hidden,
            bytes_accessed=(2 * n * in_dim + 2 * in_dim * hidden
                            + 8 * hidden + 2 * hidden * out_dim
                            + 4 * out_dim + 4 * n * out_dim)),
    )(x_bf, w1_bf, gamma_2d, beta_2d, w2_bf, b2_2d)

    return out


def _reference_forward(x, w1, b1, gamma, beta, w2, b2):
    """Pure-JAX reference using the same bf16-matmul / f32-accumulate recipe."""
    xb = x.astype(jnp.bfloat16)
    w1b = w1.astype(jnp.bfloat16)
    w2b = w2.astype(jnp.bfloat16)
    h = jnp.dot(xb, w1b, preferred_element_type=jnp.float32) + b1
    mean = jnp.mean(h, axis=0, keepdims=True)
    var = jnp.mean((h - mean) ** 2, axis=0, keepdims=True)
    h = (h - mean) * (gamma * lax.rsqrt(var + BN_EPS)) + beta
    h = jnp.maximum(h, 0.0).astype(jnp.bfloat16)
    return jnp.dot(h, w2b, preferred_element_type=jnp.float32) + b2


if __name__ == "__main__":
    # Scaled-down shapes consistent with the module (defaults in_dim=2048,
    # hidden=512, out_dim=2048).  Lane dims >= 128, and tn_h=128 forces a real
    # multi-step grid over the hidden axis so the accumulator path is exercised.
    N, IN_DIM, HIDDEN, OUT_DIM = 64, 512, 256, 512

    key = jax.random.PRNGKey(0)
    kx, kw1, kb1, kw2, kb2 = jax.random.split(key, 5)

    x = jax.random.normal(kx, (N, IN_DIM), dtype=jnp.float32)

    # Linear weights stored pre-transposed: (in_features, out_features).
    w1 = jax.random.normal(kw1, (IN_DIM, HIDDEN), dtype=jnp.float32) / jnp.sqrt(IN_DIM)
    b1 = jax.random.normal(kb1, (HIDDEN,), dtype=jnp.float32) * 0.01
    gamma = jnp.ones((HIDDEN,), dtype=jnp.float32)   # BatchNorm1d default weight
    beta = jnp.zeros((HIDDEN,), dtype=jnp.float32)   # BatchNorm1d default bias
    w2 = jax.random.normal(kw2, (HIDDEN, OUT_DIM), dtype=jnp.float32) / jnp.sqrt(HIDDEN)
    b2 = jax.random.normal(kb2, (OUT_DIM,), dtype=jnp.float32) * 0.01

    out = prediction_mlp_forward(x, w1, b1, gamma, beta, w2, b2, tn_h=128)
    out = jax.block_until_ready(out)

    ref = _reference_forward(x, w1, b1, gamma, beta, w2, b2)
    assert out.shape == (N, OUT_DIM)
    assert jnp.allclose(out, ref, atol=1e-2, rtol=1e-2), "mismatch vs JAX reference"

    print("KERNEL_OK")
</pallas_src>

<mosaic_0001>
module attributes {stable_mosaic.version = 11 : i64} {
  func.func @_fused_mlp_kernel(%arg0: i32, %arg1: memref<64x512xbf16, #tpu.memory_space<vmem>>, %arg2: memref<512x128xbf16, #tpu.memory_space<vmem>>, %arg3: memref<1x128xf32, #tpu.memory_space<vmem>>, %arg4: memref<1x128xf32, #tpu.memory_space<vmem>>, %arg5: memref<128x512xbf16, #tpu.memory_space<vmem>>, %arg6: memref<1x512xf32, #tpu.memory_space<vmem>>, %arg7: memref<64x512xf32, #tpu.memory_space<vmem>>) attributes {dimension_semantics = [#tpu.dimension_semantics<arbitrary>], iteration_bounds = array<i64: 2>, scalar_prefetch = 0 : i64, scratch_operands = 0 : i64, tpu.core_type = #tpu.core_type<tc>, window_params = [{pipeline_mode = #tpu.pipeline_mode<synchronous>, transform_indices = @transform_0, window_bounds = array<i64: 64, 512>}, {transform_indices = @transform_1, window_bounds = array<i64: 512, 128>}, {transform_indices = @transform_2, window_bounds = array<i64: 1, 128>}, {transform_indices = @transform_3, window_bounds = array<i64: 1, 128>}, {transform_indices = @transform_4, window_bounds = array<i64: 128, 512>}, {pipeline_mode = #tpu.pipeline_mode<synchronous>, transform_indices = @transform_5, window_bounds = array<i64: 1, 512>}, {pipeline_mode = #tpu.pipeline_mode<synchronous>, transform_indices = @transform_6, window_bounds = array<i64: 64, 512>}]} {
    %c0 = arith.constant 0 : index
    %c0_0 = arith.constant 0 : index
    %0 = vector.load %arg1[%c0, %c0_0] : memref<64x512xbf16, #tpu.memory_space<vmem>>, vector<64x512xbf16>
    %c0_1 = arith.constant 0 : index
    %c0_2 = arith.constant 0 : index
    %1 = vector.load %arg2[%c0_1, %c0_2] : memref<512x128xbf16, #tpu.memory_space<vmem>>, vector<512x128xbf16>
    %cst = arith.constant dense<0.000000e+00> : vector<64x128xf32>
    %2 = tpu.matmul %0, %1, %cst {dimension_numbers = #tpu.dot_dimension_numbers<[1], [0], [0], [1], [0, 0, 1, 1], [], []>} : vector<64x512xbf16>, vector<512x128xbf16>, vector<64x128xf32> -> vector<64x128xf32>
    %cst_3 = arith.constant dense<0.000000e+00> : vector<128xf32>
    %3 = vector.multi_reduction <add>, %2, %cst_3 [0] : vector<64x128xf32> to vector<128xf32>
    %4 = vector.shape_cast %3 : vector<128xf32> to vector<1x128xf32>
    %cst_4 = arith.constant 1.562500e-02 : f32
    %5 = vector.broadcast %cst_4 : f32 to vector<1x128xf32>
    %6 = arith.mulf %4, %5 : vector<1x128xf32>
    %7 = vector.broadcast %6 : vector<1x128xf32> to vector<64x128xf32>
    %8 = arith.subf %2, %7 : vector<64x128xf32>
    %9 = arith.mulf %8, %8 : vector<64x128xf32>
    %cst_5 = arith.constant dense<0.000000e+00> : vector<128xf32>
    %10 = vector.multi_reduction <add>, %9, %cst_5 [0] : vector<64x128xf32> to vector<128xf32>
    %11 = vector.shape_cast %10 : vector<128xf32> to vector<1x128xf32>
    %cst_6 = arith.constant 1.562500e-02 : f32
    %12 = vector.broadcast %cst_6 : f32 to vector<1x128xf32>
    %13 = arith.mulf %11, %12 : vector<1x128xf32>
    %c0_7 = arith.constant 0 : index
    %c0_8 = arith.constant 0 : index
    %14 = vector.load %arg3[%c0_7, %c0_8] : memref<1x128xf32, #tpu.memory_space<vmem>>, vector<1x128xf32>
    %cst_9 = arith.constant 9.99999974E-6 : f32
    %15 = vector.broadcast %cst_9 : f32 to vector<1x128xf32>
    %16 = arith.addf %13, %15 : vector<1x128xf32>
    %17 = math.rsqrt %16 : vector<1x128xf32>
    %18 = arith.mulf %14, %17 : vector<1x128xf32>
    %19 = vector.broadcast %18 : vector<1x128xf32> to vector<64x128xf32>
    %20 = arith.mulf %8, %19 : vector<64x128xf32>
    %c0_10 = arith.constant 0 : index
    %c0_11 = arith.constant 0 : index
    %21 = vector.load %arg4[%c0_10, %c0_11] : memref<1x128xf32, #tpu.memory_space<vmem>>, vector<1x128xf32>
    %22 = vector.broadcast %21 : vector<1x128xf32> to vector<64x128xf32>
    %23 = arith.addf %20, %22 : vector<64x128xf32>
    %cst_12 = arith.constant 0.000000e+00 : f32
    %24 = vector.broadcast %cst_12 : f32 to vector<64x128xf32>
    %25 = arith.maximumf %23, %24 : vector<64x128xf32>
    %26 = arith.truncf %25 : vector<64x128xf32> to vector<64x128xbf16>
    %c0_13 = arith.constant 0 : index
    %c0_14 = arith.constant 0 : index
    %27 = vector.load %arg5[%c0_13, %c0_14] : memref<128x512xbf16, #tpu.memory_space<vmem>>, vector<128x512xbf16>
    %cst_15 = arith.constant dense<0.000000e+00> : vector<64x512xf32>
    %28 = tpu.matmul %26, %27, %cst_15 {dimension_numbers = #tpu.dot_dimension_numbers<[1], [0], [0], [1], [0, 0, 1, 1], [], []>} : vector<64x128xbf16>, vector<128x512xbf16>, vector<64x512xf32> -> vector<64x512xf32>
    %c0_i32 = arith.constant 0 : i32
    %29 = arith.cmpi eq, %arg0, %c0_i32 : i32
    %30 = arith.extui %29 : i1 to i32
    %c0_i32_16 = arith.constant 0 : i32
    %31 = arith.cmpi ne, %30, %c0_i32_16 : i32
    scf.if %31 {
      %c0_20 = arith.constant 0 : index
      %c0_21 = arith.constant 0 : index
      %38 = vector.load %arg7[%c0_20, %c0_21] : memref<64x512xf32, #tpu.memory_space<vmem>>, vector<64x512xf32>
      tpu.vector_store %arg7[%c0_20, %c0_21], %28 {strides = array<i32>} : memref<64x512xf32, #tpu.memory_space<vmem>>, vector<64x512xf32>,
    } else {
    }
    %c0_i32_17 = arith.constant 0 : i32
    %32 = arith.cmpi sgt, %arg0, %c0_i32_17 : i32
    %33 = arith.extui %32 : i1 to i32
    %c0_i32_18 = arith.constant 0 : i32
    %34 = arith.cmpi ne, %33, %c0_i32_18 : i32
    scf.if %34 {
      %c0_20 = arith.constant 0 : index
      %c0_21 = arith.constant 0 : index
      %38 = vector.load %arg7[%c0_20, %c0_21] : memref<64x512xf32, #tpu.memory_space<vmem>>, vector<64x512xf32>
      %39 = arith.addf %38, %28 : vector<64x512xf32>
      %c0_22 = arith.constant 0 : index
      %c0_23 = arith.constant 0 : index
      %40 = vector.load %arg7[%c0_22, %c0_23] : memref<64x512xf32, #tpu.memory_space<vmem>>, vector<64x512xf32>
      tpu.vector_store %arg7[%c0_22, %c0_23], %39 {strides = array<i32>} : memref<64x512xf32, #tpu.memory_space<vmem>>, vector<64x512xf32>,
    } else {
    }
    %c1_i32 = arith.constant 1 : i32
    %35 = arith.cmpi eq, %arg0, %c1_i32 : i32
    %36 = arith.extui %35 : i1 to i32
    %c0_i32_19 = arith.constant 0 : i32
    %37 = arith.cmpi ne, %36, %c0_i32_19 : i32
    scf.if %37 {
      %c0_20 = arith.constant 0 : index
      %c0_21 = arith.constant 0 : index
      %38 = vector.load %arg7[%c0_20, %c0_21] : memref<64x512xf32, #tpu.memory_space<vmem>>, vector<64x512xf32>
      %c0_22 = arith.constant 0 : index
      %c0_23 = arith.constant 0 : index
      %39 = vector.load %arg6[%c0_22, %c0_23] : memref<1x512xf32, #tpu.memory_space<vmem>>, vector<1x512xf32>
      %40 = vector.broadcast %39 : vector<1x512xf32> to vector<64x512xf32>
      %41 = arith.addf %38, %40 : vector<64x512xf32>
      %c0_24 = arith.constant 0 : index
      %c0_25 = arith.constant 0 : index
      %42 = vector.load %arg7[%c0_24, %c0_25] : memref<64x512xf32, #tpu.memory_space<vmem>>, vector<64x512xf32>
      tpu.vector_store %arg7[%c0_24, %c0_25], %41 {strides = array<i32>} : memref<64x512xf32, #tpu.memory_space<vmem>>, vector<64x512xf32>,
    } else {
    }
    return
  }
  func.func @transform_0(%arg0: i32) -> (i32, i32) {
    %c0_i32 = arith.constant 0 : i32
    %c0_i32_0 = arith.constant 0 : i32
    %c0_i32_1 = arith.constant 0 : i32
    return %c0_i32, %c0_i32_0 : i32, i32
  }
  func.func @transform_1(%arg0: i32) -> (i32, i32) {
    %c0_i32 = arith.constant 0 : i32
    %c0_i32_0 = arith.constant 0 : i32
    return %c0_i32, %arg0 : i32, i32
  }
  func.func @transform_2(%arg0: i32) -> (i32, i32) {
    %c0_i32 = arith.constant 0 : i32
    %c0_i32_0 = arith.constant 0 : i32
    return %c0_i32, %arg0 : i32, i32
  }
  func.func @transform_3(%arg0: i32) -> (i32, i32) {
    %c0_i32 = arith.constant 0 : i32
    %c0_i32_0 = arith.constant 0 : i32
    return %c0_i32, %arg0 : i32, i32
  }
  func.func @transform_4(%arg0: i32) -> (i32, i32) {
    %c0_i32 = arith.constant 0 : i32
    %c0_i32_0 = arith.constant 0 : i32
    return %arg0, %c0_i32 : i32, i32
  }
  func.func @transform_5(%arg0: i32) -> (i32, i32) {
    %c0_i32 = arith.constant 0 : i32
    %c0_i32_0 = arith.constant 0 : i32
    %c0_i32_1 = arith.constant 0 : i32
    return %c0_i32, %c0_i32_0 : i32, i32
  }
  func.func @transform_6(%arg0: i32) -> (i32, i32) {
    %c0_i32 = arith.constant 0 : i32
    %c0_i32_0 = arith.constant 0 : i32
    %c0_i32_1 = arith.constant 0 : i32
    return %c0_i32, %c0_i32_0 : i32, i32
  }
}

</mosaic_0001>

<llo_original>
// kernel: tpu_custom_call.1
$region0: #{tpu_custom_call.1}
  #allocation0 [shape = 'u32[]', space=smem, size = 0x4, offset = 0x4, fixed_abs, tag = 'smem constant byte address 0x4 - core index']
  #allocation1 [shape = 'u32[72,128]{1,0:T(1,128)}', space=vmem, size = 0x9000, scoped, tag = 'internal scratch']
  %s0 = inlined_call_operand.hbm [shape: bf16[64,512], index: 0, kind: input, shape index: {}]
  %s1 = inlined_call_operand.hbm [shape: bf16[512,256], index: 1, kind: input, shape index: {}]
  %s2 = inlined_call_operand.hbm [shape: f32[1,256], index: 2, kind: input, shape index: {}]
  %s3 = inlined_call_operand.hbm [shape: f32[1,256], index: 3, kind: input, shape index: {}]
  %s4 = inlined_call_operand.hbm [shape: bf16[256,512], index: 4, kind: input, shape index: {}]
  %s5 = inlined_call_operand.vmem [shape: f32[1,512], index: 5, kind: input, shape index: {}]
  %s6 = inlined_call_operand.hbm [shape: f32[64,512], index: 6, kind: output, shape index: {}]
  %s7 = sld [smem:[#allocation0]]
  $region89: #{tpu_custom_call.1} parent=0
    _
  %s9 = ssub.s32 1, %s7
  %s10 = scalar_select 0, %s9, %s7
  $region1: #{tpu_custom_call.1} parent=0
    #allocation2 [shape = 'u8[65536]{0}', space=vmem, size = 0x10000, scoped, tag = 'input window, operand 0, single buffered']
    #allocation3 [shape = 's32[2]{0}', space=sflag, size = 0x8, scoped, tag = 'scoped memory for tpu_custom_call.1']
    #allocation4 [shape = 's32[2]{0}', space=sflag, size = 0x8, scoped, tag = 'scoped memory for tpu_custom_call.1']
    #allocation5 [shape = 'u8[262144]{0}', space=vmem, size = 0x40000, scoped, tag = 'input window, operand 1']
    #allocation6 [shape = 's32[2]{0}', space=sflag, size = 0x8, scoped, tag = 'scoped memory for tpu_custom_call.1']
    #allocation7 [shape = 'u8[1024]{0}', space=vmem, size = 0x400, scoped, tag = 'input window, operand 2']
    #allocation8 [shape = 'u8[1024]{0}', space=vmem, size = 0x400, scoped, tag = 'input window, operand 3']
    #allocation9 [shape = 's32[2]{0}', space=sflag, size = 0x8, scoped, tag = 'scoped memory for tpu_custom_call.1']
    #allocation10 [shape = 'u8[262144]{0}', space=vmem, size = 0x40000, scoped, tag = 'input window, operand 4']
    #allocation11 [shape = 'u8[131072]{0}', space=vmem, size = 0x20000, scoped, tag = 'output window, operand 0, single buffered']
    %11 = vsyncpa [#allocation3], 0
    %12 = vsyncpa [#allocation6], 0
    %s13 = scalar_lea.sflag [#allocation6], 1
    %14 = vsyncpa %s13, 0
    %15 = vsyncpa [#allocation9], 0
    %s16 = scalar_lea.sflag [#allocation9], 1
    %17 = vsyncpa %s16, 0
    %18 = vsyncpa [#allocation4], 0
    loop: start=0, step=1, limit=4
    $region2: #{tpu_custom_call.1} parent=1 // loop_pre_header
      _
    $region3: #{tpu_custom_call.1} parent=1 // loop_header
      %s20 = sphi 0, %s24
      %p21 = scmp.ge.s32.totalorder %s20, 4
      %s28 = sphi 0, %s28
      %s30 = sphi 0, %s28
      %s31 = sphi 0, %s30
      %s45 = sphi 0, %s31
      %s51 = sphi 0, %s53
      %s54 = sphi 0, %s51
      %s55 = sphi 0, %s54
      %s71 = sphi 0, %s55
      %s77 = sphi 0, %s79
      %s80 = sphi 0, %s77
      %s81 = sphi 0, %s80
      %s97 = sphi 0, %s81
      %s103 = sphi 0, %s105
      %s106 = sphi 0, %s103
      %s107 = sphi 0, %s106
      %s123 = sphi 0, %s107
      %s129 = sphi 0, %s131
      %s132 = sphi 0, %s129
      %s133 = sphi 0, %s132
      %s149 = sphi 0, %s133
      %s153 = sphi 0, %s153
      %s155 = sphi 0, %s153
      %s156 = sphi 0, %s155
      %s170 = sphi 0, %s156
      %s174 = sphi 0, %s174
      %s176 = sphi 0, %s174
      %s177 = sphi 0, %s176
      %s191 = sphi 0, %s177
    $region4: #{tpu_custom_call.1} parent=1 // loop_header_branch
      %23 = sbr.rel (%p21) target = $region8
    $region5: #{tpu_custom_call.1} parent=1 // loop_body
      %s25 = ssub.s32 %s20, 1
      %s26 = ssub.s32 %s20, 2
      %s27 = sadd.s32 %s20, 1
      %s29 = sadd.s32 %s28, 1
      %p32 = scmp.eq.s32.totalorder %s20, 1
      %p33 = scmp.ne.s32.totalorder %s28, %s30
      %p34 = scmp.eq.s32.totalorder %s20, 0
      %p35 = por %p33, %p34
      %p36 = scmp.ne.s32.totalorder %s28, %s30
      %p37 = scmp.eq.s32.totalorder %s25, 1
      %p38 = por %p36, %p37
      %p39 = scmp.ne.s32.totalorder %s30, %s31
      %p40 = scmp.eq.s32.totalorder %s25, 0
      %p41 = por %p39, %p40
      %p42 = scmp.ne.s32.totalorder %s30, %s31
      %p43 = scmp.eq.s32.totalorder %s26, 1
      %p44 = por %p42, %p43
      %p46 = scmp.ne.s32.totalorder %s31, %s45
      %p47 = scmp.eq.s32.totalorder %s26, 0
      %p48 = por %p46, %p47
      %s49 = ssub.s32 %s20, %s27
      %p50 = scmp.eq.s32.totalorder %s49, 0
      %s52 = sadd.s32 %s51, 1
      %s53 = scalar_select %p50, %s51, %s52
      %p56 = pneg %p50
      %p57 = scmp.eq.s32.totalorder %s20, 1
      %p58 = por %p56, %p57
      %p59 = scmp.ne.s32.totalorder %s51, %s54
      %p60 = scmp.eq.s32.totalorder %s20, 0
      %p61 = por %p59, %p60
      %p62 = scmp.ne.s32.totalorder %s51, %s54
      %p63 = scmp.eq.s32.totalorder %s25, 1
      %p64 = por %p62, %p63
      %p65 = scmp.ne.s32.totalorder %s54, %s55
      %p66 = scmp.eq.s32.totalorder %s25, 0
      %p67 = por %p65, %p66
      %p68 = scmp.ne.s32.totalorder %s54, %s55
      %p69 = scmp.eq.s32.totalorder %s26, 1
      %p70 = por %p68, %p69
      %p72 = scmp.ne.s32.totalorder %s55, %s71
      %p73 = scmp.eq.s32.totalorder %s26, 0
      %p74 = por %p72, %p73
      %s75 = ssub.s32 %s20, %s27
      %p76 = scmp.eq.s32.totalorder %s75, 0
      %s78 = sadd.s32 %s77, 1
      %s79 = scalar_select %p76, %s77, %s78
      %p82 = pneg %p76
      %p83 = scmp.eq.s32.totalorder %s20, 1
      %p84 = por %p82, %p83
      %p85 = scmp.ne.s32.totalorder %s77, %s80
      %p86 = scmp.eq.s32.totalorder %s20, 0
      %p87 = por %p85, %p86
      %p88 = scmp.ne.s32.totalorder %s77, %s80
      %p89 = scmp.eq.s32.totalorder %s25, 1
      %p90 = por %p88, %p89
      %p91 = scmp.ne.s32.totalorder %s80, %s81
      %p92 = scmp.eq.s32.totalorder %s25, 0
      %p93 = por %p91, %p92
      %p94 = scmp.ne.s32.totalorder %s80, %s81
      %p95 = scmp.eq.s32.totalorder %s26, 1
      %p96 = por %p94, %p95
      %p98 = scmp.ne.s32.totalorder %s81, %s97
      %p99 = scmp.eq.s32.totalorder %s26, 0
      %p100 = por %p98, %p99
      %s101 = ssub.s32 %s20, %s27
      %p102 = scmp.eq.s32.totalorder %s101, 0
      %s104 = sadd.s32 %s103, 1
      %s105 = scalar_select %p102, %s103, %s104
      %p108 = pneg %p102
      %p109 = scmp.eq.s32.totalorder %s20, 1
      %p110 = por %p108, %p109
      %p111 = scmp.ne.s32.totalorder %s103, %s106
      %p112 = scmp.eq.s32.totalorder %s20, 0
      %p113 = por %p111, %p112
      %p114 = scmp.ne.s32.totalorder %s103, %s106
      %p115 = scmp.eq.s32.totalorder %s25, 1
      %p116 = por %p114, %p115
      %p117 = scmp.ne.s32.totalorder %s106, %s107
      %p118 = scmp.eq.s32.totalorder %s25, 0
      %p119 = por %p117, %p118
      %p120 = scmp.ne.s32.totalorder %s106, %s107
      %p121 = scmp.eq.s32.totalorder %s26, 1
      %p122 = por %p120, %p121
      %p124 = scmp.ne.s32.totalorder %s107, %s123
      %p125 = scmp.eq.s32.totalorder %s26, 0
      %p126 = por %p124, %p125
      %s127 = ssub.s32 %s20, %s27
      %p128 = scmp.eq.s32.totalorder %s127, 0
      %s130 = sadd.s32 %s129, 1
      %s131 = scalar_select %p128, %s129, %s130
      %p134 = pneg %p128
      %p135 = scmp.eq.s32.totalorder %s20, 1
      %p136 = por %p134, %p135
      %p137 = scmp.ne.s32.totalorder %s129, %s132
      %p138 = scmp.eq.s32.totalorder %s20, 0
      %p139 = por %p137, %p138
      %p140 = scmp.ne.s32.totalorder %s129, %s132
      %p141 = scmp.eq.s32.totalorder %s25, 1
      %p142 = por %p140, %p141
      %p143 = scmp.ne.s32.totalorder %s132, %s133
      %p144 = scmp.eq.s32.totalorder %s25, 0
      %p145 = por %p143, %p144
      %p146 = scmp.ne.s32.totalorder %s132, %s133
      %p147 = scmp.eq.s32.totalorder %s26, 1
      %p148 = por %p146, %p147
      %p150 = scmp.ne.s32.totalorder %s133, %s149
      %p151 = scmp.eq.s32.totalorder %s26, 0
      %p152 = por %p150, %p151
      %s154 = sadd.s32 %s153, 1
      %p157 = scmp.eq.s32.totalorder %s20, 1
      %p158 = scmp.ne.s32.totalorder %s153, %s155
      %p159 = scmp.eq.s32.totalorder %s20, 0
      %p160 = por %p158, %p159
      %p161 = scmp.ne.s32.totalorder %s153, %s155
      %p162 = scmp.eq.s32.totalorder %s25, 1
      %p163 = por %p161, %p162
      %p164 = scmp.ne.s32.totalorder %s155, %s156
      %p165 = scmp.eq.s32.totalorder %s25, 0
      %p166 = por %p164, %p165
      %p167 = scmp.ne.s32.totalorder %s155, %s156
      %p168 = scmp.eq.s32.totalorder %s26, 1
      %p169 = por %p167, %p168
      %p171 = scmp.ne.s32.totalorder %s156, %s170
      %p172 = scmp.eq.s32.totalorder %s26, 0
      %p173 = por %p171, %p172
      %s175 = sadd.s32 %s174, 1
      %p178 = scmp.eq.s32.totalorder %s20, 1
      %p179 = scmp.ne.s32.totalorder %s174, %s176
      %p180 = scmp.eq.s32.totalorder %s20, 0
      %p181 = por %p179, %p180
      %p182 = scmp.ne.s32.totalorder %s174, %s176
      %p183 = scmp.eq.s32.totalorder %s25, 1
      %p184 = por %p182, %p183
      %p185 = scmp.ne.s32.totalorder %s176, %s177
      %p186 = scmp.eq.s32.totalorder %s25, 0
      %p187 = por %p185, %p186
      %p188 = scmp.ne.s32.totalorder %s176, %s177
      %p189 = scmp.eq.s32.totalorder %s26, 1
      %p190 = por %p188, %p189
      %p192 = scmp.ne.s32.totalorder %s177, %s191
      %p193 = scmp.eq.s32.totalorder %s26, 0
      %p194 = por %p192, %p193
      %p195 = scmp.le.s32.totalorder 1, %s20
      %p196 = scmp.lt.s32.totalorder %s20, 3
      %p197 = pnand %p195, %p196
      %p198 = pneg %p197
      // Predicated region
      $region9: #{tpu_custom_call.1} parent=5 // pred_check
        _
      $region10: #{tpu_custom_call.1} parent=5 // pred_check_branch
        %200 = sbr.rel (%p197) target = $region12
      $region11: #{tpu_custom_call.1} parent=5 // pred_region
        %s201 = ssub.s32 %s20, 1
        // Predicated region
        $region13: #{tpu_custom_call.1} parent=11 // pred_check
          %p202 = pneg %p41
        $region14: #{tpu_custom_call.1} parent=11 // pred_check_branch
          %204 = sbr.rel (%p202) target = $region16
        $region15: #{tpu_custom_call.1} parent=11 // pred_region
          %206 = vsyncadd [#allocation3], 0
          %s207 = sshll.u32 %s0, 4
          %s208 = int_to_ptr.hbm [resolvable:$true] %s207
          %s209 = sshll.u32 [#allocation2], 4
          %s210 = int_to_ptr.vmem [resolvable:$true] %s209
          %215 = dma.hbm_to_vmem [thread:$0]  %s208, 2048, %s210, [#allocation3], 256, 256, 16
        $region16: #{tpu_custom_call.1} parent=11 // pred_fallthru
          _
        // Predicated region
        $region17: #{tpu_custom_call.1} parent=11 // pred_check
          %p216 = pneg %p166
        $region18: #{tpu_custom_call.1} parent=11 // pred_check_branch
          %218 = sbr.rel (%p216) target = $region20
        $region19: #{tpu_custom_call.1} parent=11 // pred_region
          _
        $region20: #{tpu_custom_call.1} parent=11 // pred_fallthru
          _
      $region12: #{tpu_custom_call.1} parent=5 // pred_fallthru
        _
      %p219 = scmp.lt.s32.totalorder %s20, 2
      // Predicated region
      $region21: #{tpu_custom_call.1} parent=5 // pred_check
        %p220 = pneg %p219
      $region22: #{tpu_custom_call.1} parent=5 // pred_check_branch
        %222 = sbr.rel (%p220) target = $region24
      $region23: #{tpu_custom_call.1} parent=5 // pred_region
        // Predicated region
        $region25: #{tpu_custom_call.1} parent=23 // pred_check
          %p223 = pneg %p61
        $region26: #{tpu_custom_call.1} parent=23 // pred_check_branch
          %225 = sbr.rel (%p223) target = $region28
        $region27: #{tpu_custom_call.1} parent=23 // pred_region
          %s226 = sand.u32 %s20, 1
          %s227 = scalar_lea.sflag [#allocation6], %s226
          %s228 = sand.u32 %s51, 1
          %s229 = smul.addr %s228, 256
          %s230 = scalar_lea.vmem [#allocation5], %s229
          %232 = vsyncadd %s227, 0
          %s233 = smul.addr %s20, 4
          %s234 = scalar_lea.hbm %s1, %s233
          %s235 = sshll.u32 %s234, 4
          %s236 = int_to_ptr.hbm [resolvable:$true] %s235
          %s237 = sshll.u32 %s230, 4
          %s238 = int_to_ptr.vmem [resolvable:$true] %s237
          %243 = dma.hbm_to_vmem [thread:$0]  %s236, 4096, %s238, %s227, 128, 64, 4
        $region28: #{tpu_custom_call.1} parent=23 // pred_fallthru
          _
        // Predicated region
        $region29: #{tpu_custom_call.1} parent=23 // pred_check
          %p244 = pneg %p87
        $region30: #{tpu_custom_call.1} parent=23 // pred_check_branch
          %246 = sbr.rel (%p244) target = $region32
        $region31: #{tpu_custom_call.1} parent=23 // pred_region
          %s247 = sand.u32 %s20, 1
          %s248 = scalar_lea.sflag [#allocation6], %s247
          %s249 = sand.u32 %s77, 1
          %s250 = scalar_lea.vmem [#allocation7], %s249
          %252 = vsyncadd %s248, 0
          %s253 = scalar_lea.hbm %s2, %s20
          %s255 = sshll.u32 %s253, 4
          %s256 = int_to_ptr.hbm [resolvable:$true] %s255
          %s257 = sshll.u32 %s250, 4
          %s258 = int_to_ptr.vmem [resolvable:$true] %s257
          %260 = dma.hbm_to_vmem [thread:$0]  %s256, 16, %s258, %s248
        $region32: #{tpu_custom_call.1} parent=23 // pred_fallthru
          _
        // Predicated region
        $region33: #{tpu_custom_call.1} parent=23 // pred_check
          %p261 = pneg %p113
        $region34: #{tpu_custom_call.1} parent=23 // pred_check_branch
          %263 = sbr.rel (%p261) target = $region36
        $region35: #{tpu_custom_call.1} parent=23 // pred_region
          %s264 = sand.u32 %s20, 1
          %s265 = scalar_lea.sflag [#allocation9], %s264
          %s266 = sand.u32 %s103, 1
          %s267 = scalar_lea.vmem [#allocation8], %s266
          %269 = vsyncadd %s265, 0
          %s270 = scalar_lea.hbm %s3, %s20
          %s272 = sshll.u32 %s270, 4
          %s273 = int_to_ptr.hbm [resolvable:$true] %s272
          %s274 = sshll.u32 %s267, 4
          %s275 = int_to_ptr.vmem [resolvable:$true] %s274
          %277 = dma.hbm_to_vmem [thread:$0]  %s273, 16, %s275, %s265
        $region36: #{tpu_custom_call.1} parent=23 // pred_fallthru
          _
        // Predicated region
        $region37: #{tpu_custom_call.1} parent=23 // pred_check
          %p278 = pneg %p139
        $region38: #{tpu_custom_call.1} parent=23 // pred_check_branch
          %280 = sbr.rel (%p278) target = $region40
        $region39: #{tpu_custom_call.1} parent=23 // pred_region
          %s281 = sand.u32 %s20, 1
          %s282 = scalar_lea.sflag [#allocation9], %s281
          %s283 = sand.u32 %s129, 1
          %s284 = smul.addr %s283, 256
          %s285 = scalar_lea.vmem [#allocation10], %s284
          %s286 = smul.u32 16, %s20
          %288 = vsyncadd %s282, 0
          %s289 = smul.addr %s286, 4
          %s290 = smul.addr %s289, 4
          %s291 = scalar_lea.hbm %s4, %s290
          %s292 = sshll.u32 %s291, 4
          %s293 = int_to_ptr.hbm [resolvable:$true] %s292
          %s294 = sshll.u32 %s285, 4
          %s295 = int_to_ptr.vmem [resolvable:$true] %s294
          %300 = dma.hbm_to_vmem [thread:$0]  %s293, 4096, %s295, %s282, 256, 256, 16
        $region40: #{tpu_custom_call.1} parent=23 // pred_fallthru
          _
      $region24: #{tpu_custom_call.1} parent=5 // pred_fallthru
        _
      %p301 = scmp.le.s32.totalorder 1, %s20
      %p302 = scmp.lt.s32.totalorder %s20, 3
      %p303 = pnand %p301, %p302
      %p304 = pneg %p303
      // Predicated region
      $region41: #{tpu_custom_call.1} parent=5 // pred_check
        _
      $region42: #{tpu_custom_call.1} parent=5 // pred_check_branch
        %306 = sbr.rel (%p303) target = $region44
      $region43: #{tpu_custom_call.1} parent=5 // pred_region
        %s307 = ssub.s32 %s20, 1
        // Predicated region
        $region45: #{tpu_custom_call.1} parent=43 // pred_check
          %p308 = pneg %p41
        $region46: #{tpu_custom_call.1} parent=43 // pred_check_branch
          %310 = sbr.rel (%p308) target = $region48
        $region47: #{tpu_custom_call.1} parent=43 // pred_region
          %312 = dma.done [#allocation3], 2048
        $region48: #{tpu_custom_call.1} parent=43 // pred_fallthru
          _
        %s313 = sand.u32 %s25, 1
        %s314 = scalar_lea.sflag [#allocation6], %s313
        %s315 = sand.u32 %s54, 1
        %s316 = smul.addr %s315, 256
        %s317 = scalar_lea.vmem [#allocation5], %s316
        // Predicated region
        $region49: #{tpu_custom_call.1} parent=43 // pred_check
          %p318 = pneg %p67
        $region50: #{tpu_custom_call.1} parent=43 // pred_check_branch
          %320 = sbr.rel (%p318) target = $region52
        $region51: #{tpu_custom_call.1} parent=43 // pred_region
          %322 = dma.done %s314, 4096
        $region52: #{tpu_custom_call.1} parent=43 // pred_fallthru
          _
        %s323 = sand.u32 %s25, 1
        %s324 = scalar_lea.sflag [#allocation6], %s323
        %s325 = sand.u32 %s80, 1
        %s326 = scalar_lea.vmem [#allocation7], %s325
        // Predicated region
        $region53: #{tpu_custom_call.1} parent=43 // pred_check
          %p327 = pneg %p93
        $region54: #{tpu_custom_call.1} parent=43 // pred_check_branch
          %329 = sbr.rel (%p327) target = $region56
        $region55: #{tpu_custom_call.1} parent=43 // pred_region
          %331 = dma.done %s324, 16
        $region56: #{tpu_custom_call.1} parent=43 // pred_fallthru
          _
        %s332 = sand.u32 %s25, 1
        %s333 = scalar_lea.sflag [#allocation9], %s332
        %s334 = sand.u32 %s106, 1
        %s335 = scalar_lea.vmem [#allocation8], %s334
        // Predicated region
        $region57: #{tpu_custom_call.1} parent=43 // pred_check
          %p336 = pneg %p119
        $region58: #{tpu_custom_call.1} parent=43 // pred_check_branch
          %338 = sbr.rel (%p336) target = $region60
        $region59: #{tpu_custom_call.1} parent=43 // pred_region
          %340 = dma.done %s333, 16
        $region60: #{tpu_custom_call.1} parent=43 // pred_fallthru
          _
        %s341 = sand.u32 %s25, 1
        %s342 = scalar_lea.sflag [#allocation9], %s341
        %s343 = sand.u32 %s132, 1
        %s344 = smul.addr %s343, 256
        %s345 = scalar_lea.vmem [#allocation10], %s344
        // Predicated region
        $region61: #{tpu_custom_call.1} parent=43 // pred_check
          %p346 = pneg %p145
        $region62: #{tpu_custom_call.1} parent=43 // pred_check_branch
          %348 = sbr.rel (%p346) target = $region64
        $region63: #{tpu_custom_call.1} parent=43 // pred_region
          %350 = dma.done %s342, 4096
        $region64: #{tpu_custom_call.1} parent=43 // pred_fallthru
          _
        %p351 = pneg %p41
        %p352 = pneg %p38
        %s353 = sand.u32 %s25, 1
        %s354 = scalar_lea.sflag [#allocation6], %s353
        %s355 = sand.u32 %s54, 1
        %s356 = smul.addr %s355, 256
        %s357 = scalar_lea.vmem [#allocation5], %s356
        %p358 = pneg %p67
        %p359 = pneg %p64
        %s360 = sand.u32 %s25, 1
        %s361 = scalar_lea.sflag [#allocation6], %s360
        %s362 = sand.u32 %s80, 1
        %s363 = scalar_lea.vmem [#allocation7], %s362
        %p364 = pneg %p93
        %p365 = pneg %p90
        %s366 = sand.u32 %s25, 1
        %s367 = scalar_lea.sflag [#allocation9], %s366
        %s368 = sand.u32 %s106, 1
        %s369 = scalar_lea.vmem [#allocation8], %s368
        %p370 = pneg %p119
        %p371 = pneg %p116
        %s372 = sand.u32 %s25, 1
        %s373 = scalar_lea.sflag [#allocation9], %s372
        %s374 = sand.u32 %s132, 1
        %s375 = smul.addr %s374, 256
        %s376 = scalar_lea.vmem [#allocation10], %s375
        %p377 = pneg %p145
        %p378 = pneg %p142
        %p379 = pneg %p166
        %p380 = pneg %p163
        %p381 = pneg %p187
        %p382 = pneg %p184
        %s383 = smul.u32 16, %s25
        %v384 = vld [vmem:[#allocation2] sm:$0xff]
        %v385 = vld [vmem:[#allocation2 + $0x8] sm:$0xff]
        %v386 = vld [vmem:[#allocation2 + $0x10] sm:$0xff]
        %v387 = vld [vmem:[#allocation2 + $0x18] sm:$0xff]
        %v388 = vld [vmem:[#allocation2 + $0x20] sm:$0xff]
        %v389 = vld [vmem:[#allocation2 + $0x28] sm:$0xff]
        %v390 = vld [vmem:[#allocation2 + $0x30] sm:$0xff]
        %v391 = vld [vmem:[#allocation2 + $0x38] sm:$0xff]
        %v392 = vld [vmem:[#allocation2 + $0x40] sm:$0xff]
        %v393 = vld [vmem:[#allocation2 + $0x48] sm:$0xff]
        %v394 = vld [vmem:[#allocation2 + $0x50] sm:$0xff]
        %v395 = vld [vmem:[#allocation2 + $0x58] sm:$0xff]
        %v396 = vld [vmem:[#allocation2 + $0x60] sm:$0xff]
        %v397 = vld [vmem:[#allocation2 + $0x68] sm:$0xff]
        %v398 = vld [vmem:[#allocation2 + $0x70] sm:$0xff]
        %v399 = vld [vmem:[#allocation2 + $0x78] sm:$0xff]
        %v400 = vld [vmem:[%s317] sm:$0xf]
        %v401 = vld [vmem:[%s317 + $0x4] sm:$0xf]
        %v402 = vld [vmem:[%s317 + $0x8] sm:$0xf]
        %v403 = vld [vmem:[%s317 + $0xc] sm:$0xf]
        %v404 = vld [vmem:[%s317 + $0x10] sm:$0xf]
        %v405 = vld [vmem:[%s317 + $0x14] sm:$0xf]
        %v406 = vld [vmem:[%s317 + $0x18] sm:$0xf]
        %v407 = vld [vmem:[%s317 + $0x1c] sm:$0xf]
        %v408 = vld [vmem:[%s317 + $0x20] sm:$0xf]
        %v409 = vld [vmem:[%s317 + $0x24] sm:$0xf]
        %v410 = vld [vmem:[%s317 + $0x28] sm:$0xf]
        %v411 = vld [vmem:[%s317 + $0x2c] sm:$0xf]
        %v412 = vld [vmem:[%s317 + $0x30] sm:$0xf]
        %v413 = vld [vmem:[%s317 + $0x34] sm:$0xf]
        %v414 = vld [vmem:[%s317 + $0x38] sm:$0xf]
        %v415 = vld [vmem:[%s317 + $0x3c] sm:$0xf]
        %v416 = vld [vmem:[%s317 + $0x40] sm:$0xf]
        %v417 = vld [vmem:[%s317 + $0x44] sm:$0xf]
        %v418 = vld [vmem:[%s317 + $0x48] sm:$0xf]
        %v419 = vld [vmem:[%s317 + $0x4c] sm:$0xf]
        %v420 = vld [vmem:[%s317 + $0x50] sm:$0xf]
        %v421 = vld [vmem:[%s317 + $0x54] sm:$0xf]
        %v422 = vld [vmem:[%s317 + $0x58] sm:$0xf]
        %v423 = vld [vmem:[%s317 + $0x5c] sm:$0xf]
        %v424 = vld [vmem:[%s317 + $0x60] sm:$0xf]
        %v425 = vld [vmem:[%s317 + $0x64] sm:$0xf]
        %v426 = vld [vmem:[%s317 + $0x68] sm:$0xf]
        %v427 = vld [vmem:[%s317 + $0x6c] sm:$0xf]
        %v428 = vld [vmem:[%s317 + $0x70] sm:$0xf]
        %v429 = vld [vmem:[%s317 + $0x74] sm:$0xf]
        %v430 = vld [vmem:[%s317 + $0x78] sm:$0xf]
        %v431 = vld [vmem:[%s317 + $0x7c] sm:$0xf]
        %v432 = vld [vmem:[%s317 + $0x80] sm:$0xf]
        %v433 = vld [vmem:[%s317 + $0x84] sm:$0xf]
        %v434 = vld [vmem:[%s317 + $0x88] sm:$0xf]
        %v435 = vld [vmem:[%s317 + $0x8c] sm:$0xf]
        %v436 = vld [vmem:[%s317 + $0x90] sm:$0xf]
        %v437 = vld [vmem:[%s317 + $0x94] sm:$0xf]
        %v438 = vld [vmem:[%s317 + $0x98] sm:$0xf]
        %v439 = vld [vmem:[%s317 + $0x9c] sm:$0xf]
        %v440 = vld [vmem:[%s317 + $0xa0] sm:$0xf]
        %v441 = vld [vmem:[%s317 + $0xa4] sm:$0xf]
        %v442 = vld [vmem:[%s317 + $0xa8] sm:$0xf]
        %v443 = vld [vmem:[%s317 + $0xac] sm:$0xf]
        %v444 = vld [vmem:[%s317 + $0xb0] sm:$0xf]
        %v445 = vld [vmem:[%s317 + $0xb4] sm:$0xf]
        %v446 = vld [vmem:[%s317 + $0xb8] sm:$0xf]
        %v447 = vld [vmem:[%s317 + $0xbc] sm:$0xf]
        %v448 = vld [vmem:[%s317 + $0xc0] sm:$0xf]
        %v449 = vld [vmem:[%s317 + $0xc4] sm:$0xf]
        %v450 = vld [vmem:[%s317 + $0xc8] sm:$0xf]
        %v451 = vld [vmem:[%s317 + $0xcc] sm:$0xf]
        %v452 = vld [vmem:[%s317 + $0xd0] sm:$0xf]
        %v453 = vld [vmem:[%s317 + $0xd4] sm:$0xf]
        %v454 = vld [vmem:[%s317 + $0xd8] sm:$0xf]
        %v455 = vld [vmem:[%s317 + $0xdc] sm:$0xf]
        %v456 = vld [vmem:[%s317 + $0xe0] sm:$0xf]
        %v457 = vld [vmem:[%s317 + $0xe4] sm:$0xf]
        %v458 = vld [vmem:[%s317 + $0xe8] sm:$0xf]
        %v459 = vld [vmem:[%s317 + $0xec] sm:$0xf]
        %v460 = vld [vmem:[%s317 + $0xf0] sm:$0xf]
        %v461 = vld [vmem:[%s317 + $0xf4] sm:$0xf]
        %v462 = vld [vmem:[%s317 + $0xf8] sm:$0xf]
        %v463 = vld [vmem:[%s317 + $0xfc] sm:$0xf]
        %v480 = vunpack.c.l.b16 %v384
        %v481 = vunpack.c.h.b16 %v384
        %v482 = vunpack.c.l.b16 %v385
        %v483 = vunpack.c.h.b16 %v385
        %v484 = vunpack.c.l.b16 %v386
        %v485 = vunpack.c.h.b16 %v386
        %v486 = vunpack.c.l.b16 %v387
        %v487 = vunpack.c.h.b16 %v387
        %v488 = vunpack.c.l.b16 %v388
        %v489 = vunpack.c.h.b16 %v388
        %v490 = vunpack.c.l.b16 %v389
        %v491 = vunpack.c.h.b16 %v389
        %v492 = vunpack.c.l.b16 %v390
        %v493 = vunpack.c.h.b16 %v390
        %v494 = vunpack.c.l.b16 %v391
        %v495 = vunpack.c.h.b16 %v391
        %v496 = vunpack.c.l.b16 %v392
        %v497 = vunpack.c.h.b16 %v392
        %v498 = vunpack.c.l.b16 %v393
        %v499 = vunpack.c.h.b16 %v393
        %v500 = vunpack.c.l.b16 %v394
        %v501 = vunpack.c.h.b16 %v394
        %v502 = vunpack.c.l.b16 %v395
        %v503 = vunpack.c.h.b16 %v395
        %v504 = vunpack.c.l.b16 %v396
        %v505 = vunpack.c.h.b16 %v396
        %v506 = vunpack.c.l.b16 %v397
        %v507 = vunpack.c.h.b16 %v397
        %v508 = vunpack.c.l.b16 %v398
        %v509 = vunpack.c.h.b16 %v398
        %v510 = vunpack.c.l.b16 %v399
        %v511 = vunpack.c.h.b16 %v399
        %v512 = vpack.c.b16 %v484, %v480
        %v513 = vpack.c.b16 %v485, %v481
        %v514 = vpack.c.b16 %v486, %v482
        %v515 = vpack.c.b16 %v487, %v483
        %v516 = vpack.c.b16 %v492, %v488
        %v517 = vpack.c.b16 %v493, %v489
        %v518 = vpack.c.b16 %v494, %v490
        %v519 = vpack.c.b16 %v495, %v491
        %v520 = vpack.c.b16 %v500, %v496
        %v521 = vpack.c.b16 %v501, %v497
        %v522 = vpack.c.b16 %v502, %v498
        %v523 = vpack.c.b16 %v503, %v499
        %v524 = vpack.c.b16 %v508, %v504
        %v525 = vpack.c.b16 %v509, %v505
        %v526 = vpack.c.b16 %v510, %v506
        %v527 = vpack.c.b16 %v511, %v507
        %v608 = vunpack.c.l.b16 %v400
        %v609 = vunpack.c.l.b16 %v401
        %v610 = vunpack.c.l.b16 %v402
        %v611 = vunpack.c.l.b16 %v403
        %v612 = vunpack.c.l.b16 %v404
        %v613 = vunpack.c.l.b16 %v405
        %v614 = vunpack.c.l.b16 %v406
        %v615 = vunpack.c.l.b16 %v407
        %v616 = vunpack.c.l.b16 %v408
        %v617 = vunpack.c.l.b16 %v409
        %v618 = vunpack.c.l.b16 %v410
        %v619 = vunpack.c.l.b16 %v411
        %v620 = vunpack.c.l.b16 %v412
        %v621 = vunpack.c.l.b16 %v413
        %v622 = vunpack.c.l.b16 %v414
        %v623 = vunpack.c.l.b16 %v415
        %v624 = vunpack.c.l.b16 %v416
        %v625 = vunpack.c.l.b16 %v417
        %v626 = vunpack.c.l.b16 %v418
        %v627 = vunpack.c.l.b16 %v419
        %v628 = vunpack.c.l.b16 %v420
        %v629 = vunpack.c.l.b16 %v421
        %v630 = vunpack.c.l.b16 %v422
        %v631 = vunpack.c.l.b16 %v423
        %v632 = vunpack.c.l.b16 %v424
        %v633 = vunpack.c.l.b16 %v425
        %v634 = vunpack.c.l.b16 %v426
        %v635 = vunpack.c.l.b16 %v427
        %v636 = vunpack.c.l.b16 %v428
        %v637 = vunpack.c.l.b16 %v429
        %v638 = vunpack.c.l.b16 %v430
        %v639 = vunpack.c.l.b16 %v431
        %v640 = vunpack.c.l.b16 %v432
        %v641 = vunpack.c.l.b16 %v433
        %v642 = vunpack.c.l.b16 %v434
        %v643 = vunpack.c.l.b16 %v435
        %v644 = vunpack.c.l.b16 %v436
        %v645 = vunpack.c.l.b16 %v437
        %v646 = vunpack.c.l.b16 %v438
        %v647 = vunpack.c.l.b16 %v439
        %v648 = vunpack.c.l.b16 %v440
        %v649 = vunpack.c.l.b16 %v441
        %v650 = vunpack.c.l.b16 %v442
        %v651 = vunpack.c.l.b16 %v443
        %v652 = vunpack.c.l.b16 %v444
        %v653 = vunpack.c.l.b16 %v445
        %v654 = vunpack.c.l.b16 %v446
        %v655 = vunpack.c.l.b16 %v447
        %v656 = vunpack.c.l.b16 %v448
        %v657 = vunpack.c.l.b16 %v449
        %v658 = vunpack.c.l.b16 %v450
        %v659 = vunpack.c.l.b16 %v451
        %v660 = vunpack.c.l.b16 %v452
        %v661 = vunpack.c.l.b16 %v453
        %v662 = vunpack.c.l.b16 %v454
        %v663 = vunpack.c.l.b16 %v455
        %v664 = vunpack.c.l.b16 %v456
        %v665 = vunpack.c.l.b16 %v457
        %v666 = vunpack.c.l.b16 %v458
        %v667 = vunpack.c.l.b16 %v459
        %v668 = vunpack.c.l.b16 %v460
        %v669 = vunpack.c.l.b16 %v461
        %v670 = vunpack.c.l.b16 %v462
        %v671 = vunpack.c.l.b16 %v463
        %v672 = vpack.c.b16 %v609, %v608
        %v673 = vpack.c.b16 %v611, %v610
        %v674 = vpack.c.b16 %v613, %v612
        %v675 = vpack.c.b16 %v615, %v614
        %v676 = vpack.c.b16 %v617, %v616
        %v677 = vpack.c.b16 %v619, %v618
        %v678 = vpack.c.b16 %v621, %v620
        %v679 = vpack.c.b16 %v623, %v622
        %v680 = vpack.c.b16 %v625, %v624
        %v681 = vpack.c.b16 %v627, %v626
        %v682 = vpack.c.b16 %v629, %v628
        %v683 = vpack.c.b16 %v631, %v630
        %v684 = vpack.c.b16 %v633, %v632
        %v685 = vpack.c.b16 %v635, %v634
        %v686 = vpack.c.b16 %v637, %v636
        %v687 = vpack.c.b16 %v639, %v638
        %v688 = vpack.c.b16 %v641, %v640
        %v689 = vpack.c.b16 %v643, %v642
        %v690 = vpack.c.b16 %v645, %v644
        %v691 = vpack.c.b16 %v647, %v646
        %v692 = vpack.c.b16 %v649, %v648
        %v693 = vpack.c.b16 %v651, %v650
        %v694 = vpack.c.b16 %v653, %v652
        %v695 = vpack.c.b16 %v655, %v654
        %v696 = vpack.c.b16 %v657, %v656
        %v697 = vpack.c.b16 %v659, %v658
        %v698 = vpack.c.b16 %v661, %v660
        %v699 = vpack.c.b16 %v663, %v662
        %v700 = vpack.c.b16 %v665, %v664
        %v701 = vpack.c.b16 %v667, %v666
        %v702 = vpack.c.b16 %v669, %v668
        %v703 = vpack.c.b16 %v671, %v670
        %736 = vmatpush.bf16.msra.mxu0 %v679
        %737 = vmatpush.bf16.msra.mxu0 %v678
        %738 = vmatpush.bf16.msra.mxu0 %v677
        %739 = vmatpush.bf16.msra.mxu0 %v676
        %740 = vmatpush.bf16.msra.mxu0 %v675
        %741 = vmatpush.bf16.msra.mxu0 %v674
        %742 = vmatpush.bf16.msra.mxu0 %v673
        %743 = vmatpush.bf16.msra.mxu0 %v672
        %744 = vmatmul.bf16.gmra.mxu0 %v512
        %v745 = vpop.f32.mrf.mxu0
        %v746 = vadd.f32 0.0, %v745
        %v747 = vpop.f32.mrf.mxu0
        %v748 = vadd.f32 0.0, %v747
        %749 = vmatmul.bf16.gmra.mxu0 %v516
        %v750 = vpop.f32.mrf.mxu0
        %v751 = vadd.f32 0.0, %v750
        %v752 = vpop.f32.mrf.mxu0
        %v753 = vadd.f32 0.0, %v752
        %754 = vmatmul.bf16.gmra.mxu0 %v520
        %v755 = vpop.f32.mrf.mxu0
        %v756 = vadd.f32 0.0, %v755
        %v757 = vpop.f32.mrf.mxu0
        %v758 = vadd.f32 0.0, %v757
        %759 = vmatmul.bf16.gmra.mxu0 %v524
        %v760 = vpop.f32.mrf.mxu0
        %v761 = vadd.f32 0.0, %v760
        %v762 = vpop.f32.mrf.mxu0
        %v763 = vadd.f32 0.0, %v762
        %764 = vdwg.mxu0
        %765 = vmatpush.bf16.msra.mxu0 %v687
        %766 = vmatpush.bf16.msra.mxu0 %v686
        %767 = vmatpush.bf16.msra.mxu0 %v685
        %768 = vmatpush.bf16.msra.mxu0 %v684
        %769 = vmatpush.bf16.msra.mxu0 %v683
        %770 = vmatpush.bf16.msra.mxu0 %v682
        %771 = vmatpush.bf16.msra.mxu0 %v681
        %772 = vmatpush.bf16.msra.mxu0 %v680
        %773 = vmatmul.bf16.gmra.mxu0 %v513
        %v774 = vpop.f32.mrf.mxu0
        %v775 = vadd.f32 %v746, %v774
        %v776 = vpop.f32.mrf.mxu0
        %v777 = vadd.f32 %v748, %v776
        %778 = vmatmul.bf16.gmra.mxu0 %v517
        %v779 = vpop.f32.mrf.mxu0
        %v780 = vadd.f32 %v751, %v779
        %v781 = vpop.f32.mrf.mxu0
        %v782 = vadd.f32 %v753, %v781
        %783 = vmatmul.bf16.gmra.mxu0 %v521
        %v784 = vpop.f32.mrf.mxu0
        %v785 = vadd.f32 %v756, %v784
        %v786 = vpop.f32.mrf.mxu0
        %v787 = vadd.f32 %v758, %v786
        %788 = vmatmul.bf16.gmra.mxu0 %v525
        %v789 = vpop.f32.mrf.mxu0
        %v790 = vadd.f32 %v761, %v789
        %v791 = vpop.f32.mrf.mxu0
        %v792 = vadd.f32 %v763, %v791
        %793 = vdwg.mxu0
        %794 = vmatpush.bf16.msra.mxu0 %v695
        %795 = vmatpush.bf16.msra.mxu0 %v694
        %796 = vmatpush.bf16.msra.mxu0 %v693
        %797 = vmatpush.bf16.msra.mxu0 %v692
        %798 = vmatpush.bf16.msra.mxu0 %v691
        %799 = vmatpush.bf16.msra.mxu0 %v690
        %800 = vmatpush.bf16.msra.mxu0 %v689
        %801 = vmatpush.bf16.msra.mxu0 %v688
        %802 = vmatmul.bf16.gmra.mxu0 %v514
        %v803 = vpop.f32.mrf.mxu0
        %v804 = vadd.f32 %v775, %v803
        %v805 = vpop.f32.mrf.mxu0
        %v806 = vadd.f32 %v777, %v805
        %807 = vmatmul.bf16.gmra.mxu0 %v518
        %v808 = vpop.f32.mrf.mxu0
        %v809 = vadd.f32 %v780, %v808
        %v810 = vpop.f32.mrf.mxu0
        %v811 = vadd.f32 %v782, %v810
        %812 = vmatmul.bf16.gmra.mxu0 %v522
        %v813 = vpop.f32.mrf.mxu0
        %v814 = vadd.f32 %v785, %v813
        %v815 = vpop.f32.mrf.mxu0
        %v816 = vadd.f32 %v787, %v815
        %817 = vmatmul.bf16.gmra.mxu0 %v526
        %v818 = vpop.f32.mrf.mxu0
        %v819 = vadd.f32 %v790, %v818
        %v820 = vpop.f32.mrf.mxu0
        %v821 = vadd.f32 %v792, %v820
        %822 = vdwg.mxu0
        %823 = vmatpush.bf16.msra.mxu0 %v703
        %824 = vmatpush.bf16.msra.mxu0 %v702
        %825 = vmatpush.bf16.msra.mxu0 %v701
        %826 = vmatpush.bf16.msra.mxu0 %v700
        %827 = vmatpush.bf16.msra.mxu0 %v699
        %828 = vmatpush.bf16.msra.mxu0 %v698
        %829 = vmatpush.bf16.msra.mxu0 %v697
        %830 = vmatpush.bf16.msra.mxu0 %v696
        %831 = vmatmul.bf16.gmra.mxu0 %v515
        %v832 = vpop.f32.mrf.mxu0
        %v833 = vadd.f32 %v804, %v832
        %v834 = vpop.f32.mrf.mxu0
        %v835 = vadd.f32 %v806, %v834
        %836 = vmatmul.bf16.gmra.mxu0 %v519
        %v837 = vpop.f32.mrf.mxu0
        %v838 = vadd.f32 %v809, %v837
        %v839 = vpop.f32.mrf.mxu0
        %v840 = vadd.f32 %v811, %v839
        %841 = vmatmul.bf16.gmra.mxu0 %v523
        %v842 = vpop.f32.mrf.mxu0
        %v843 = vadd.f32 %v814, %v842
        %v844 = vpop.f32.mrf.mxu0
        %v845 = vadd.f32 %v816, %v844
        %846 = vmatmul.bf16.gmra.mxu0 %v527
        %v847 = vpop.f32.mrf.mxu0
        %v848 = vadd.f32 %v819, %v847
        %v849 = vpop.f32.mrf.mxu0
        %v850 = vadd.f32 %v821, %v849
        %851 = vdwg.mxu0
        %v852 = vadd.f32 %v833, %v835
        %v853 = vadd.f32 %v852, %v838
        %v854 = vadd.f32 %v853, %v840
        %v855 = vadd.f32 %v854, %v843
        %v856 = vadd.f32 %v855, %v845
        %v857 = vadd.f32 %v856, %v848
        %v858 = vadd.f32 %v857, %v850
        %v859 = vrot.slane %v858, 4
        %v860 = vadd.f32 %v858, %v859
        %v861 = vrot.slane %v860, 2
        %v862 = vadd.f32 %v860, %v861
        %v863 = vrot.slane %v862, 1
        %v864 = vadd.f32 %v862, %v863
        %v865 = vmul.f32 %v864, 0.015625
        %v866 = vsub.f32 %v833, %v865
        %v867 = vsub.f32 %v835, %v865
        %v868 = vsub.f32 %v838, %v865
        %v869 = vsub.f32 %v840, %v865
        %v870 = vsub.f32 %v843, %v865
        %v871 = vsub.f32 %v845, %v865
        %v872 = vsub.f32 %v848, %v865
        %v873 = vsub.f32 %v850, %v865
        %v874 = vmul.f32 %v866, %v866
        %v875 = vmul.f32 %v867, %v867
        %v876 = vmul.f32 %v868, %v868
        %v877 = vmul.f32 %v869, %v869
        %v878 = vmul.f32 %v870, %v870
        %v879 = vmul.f32 %v871, %v871
        %v880 = vmul.f32 %v872, %v872
        %v881 = vmul.f32 %v873, %v873
        %v882 = vadd.f32 %v874, %v875
        %v883 = vadd.f32 %v882, %v876
        %v884 = vadd.f32 %v883, %v877
        %v885 = vadd.f32 %v884, %v878
        %v886 = vadd.f32 %v885, %v879
        %v887 = vadd.f32 %v886, %v880
        %v888 = vadd.f32 %v887, %v881
        %v889 = vrot.slane %v888, 4
        %v890 = vadd.f32 %v888, %v889
        %v891 = vrot.slane %v890, 2
        %v892 = vadd.f32 %v890, %v891
        %v893 = vrot.slane %v892, 1
        %v894 = vadd.f32 %v892, %v893
        %v895 = vmul.f32 %v894, 0.015625
        %v896 = vld [vmem:[%s326] sm:$0x1]
        %v897 = vadd.f32 %v895, 1e-05
        %v898 = vrsqrt.pop %v897
        %v899 = vmul.f32 %v898, %v897
        %v900 = vmul.f32 %v899, %v898
        %v901 = vmul.f32 0.5, %v900
        %v902 = vsub.f32 1.5, %v901
        %v903 = vmul.f32 %v898, %v902
        %vm904 = vweird.f32 %v897
        %vm905 = vweird.f32 %v898
        %vm906 = vmor %vm904, %vm905
        %v907 = vsel %vm906, %v898, %v903
        %v908 = vmul.f32 %v896, %v907
        %v910 = vperm.slane %v908, 0
        %v912 = vmul.f32 %v866, %v910
        %v913 = vmul.f32 %v867, %v910
        %v914 = vmul.f32 %v868, %v910
        %v915 = vmul.f32 %v869, %v910
        %v916 = vmul.f32 %v870, %v910
        %v917 = vmul.f32 %v871, %v910
        %v918 = vmul.f32 %v872, %v910
        %v919 = vmul.f32 %v873, %v910
        %v920 = vld [vmem:[%s335] sm:$0x1]
        %v922 = vperm.slane %v920, 0
        %v924 = vadd.f32 %v912, %v922
        %v925 = vadd.f32 %v913, %v922
        %v926 = vadd.f32 %v914, %v922
        %v927 = vadd.f32 %v915, %v922
        %v928 = vadd.f32 %v916, %v922
        %v929 = vadd.f32 %v917, %v922
        %v930 = vadd.f32 %v918, %v922
        %v931 = vadd.f32 %v919, %v922
        %v932 = vmax.f32 %v924, 0.0
        %v933 = vmax.f32 %v925, 0.0
        %v934 = vmax.f32 %v926, 0.0
        %v935 = vmax.f32 %v927, 0.0
        %v936 = vmax.f32 %v928, 0.0
        %v937 = vmax.f32 %v929, 0.0
        %v938 = vmax.f32 %v930, 0.0
        %v939 = vmax.f32 %v931, 0.0
        %v940 = vpack.c.bf16 %v933, %v932
        %v941 = vpack.c.bf16 %v935, %v934
        %v942 = vpack.c.bf16 %v937, %v936
        %v943 = vpack.c.bf16 %v939, %v938
        %v944 = vld [vmem:[%s345] sm:$0xff]
        %v945 = vld [vmem:[%s345 + $0x8] sm:$0xff]
        %v946 = vld [vmem:[%s345 + $0x10] sm:$0xff]
        %v947 = vld [vmem:[%s345 + $0x18] sm:$0xff]
        %v948 = vld [vmem:[%s345 + $0x20] sm:$0xff]
        %v949 = vld [vmem:[%s345 + $0x28] sm:$0xff]
        %v950 = vld [vmem:[%s345 + $0x30] sm:$0xff]
        %v951 = vld [vmem:[%s345 + $0x38] sm:$0xff]
        %v952 = vld [vmem:[%s345 + $0x40] sm:$0xff]
        %v953 = vld [vmem:[%s345 + $0x48] sm:$0xff]
        %v954 = vld [vmem:[%s345 + $0x50] sm:$0xff]
        %v955 = vld [vmem:[%s345 + $0x58] sm:$0xff]
        %v956 = vld [vmem:[%s345 + $0x60] sm:$0xff]
        %v957 = vld [vmem:[%s345 + $0x68] sm:$0xff]
        %v958 = vld [vmem:[%s345 + $0x70] sm:$0xff]
        %v959 = vld [vmem:[%s345 + $0x78] sm:$0xff]
        %v960 = vld [vmem:[%s345 + $0x80] sm:$0xff]
        %v961 = vld [vmem:[%s345 + $0x88] sm:$0xff]
        %v962 = vld [vmem:[%s345 + $0x90] sm:$0xff]
        %v963 = vld [vmem:[%s345 + $0x98] sm:$0xff]
        %v964 = vld [vmem:[%s345 + $0xa0] sm:$0xff]
        %v965 = vld [vmem:[%s345 + $0xa8] sm:$0xff]
        %v966 = vld [vmem:[%s345 + $0xb0] sm:$0xff]
        %v967 = vld [vmem:[%s345 + $0xb8] sm:$0xff]
        %v968 = vld [vmem:[%s345 + $0xc0] sm:$0xff]
        %v969 = vld [vmem:[%s345 + $0xc8] sm:$0xff]
        %v970 = vld [vmem:[%s345 + $0xd0] sm:$0xff]
        %v971 = vld [vmem:[%s345 + $0xd8] sm:$0xff]
        %v972 = vld [vmem:[%s345 + $0xe0] sm:$0xff]
        %v973 = vld [vmem:[%s345 + $0xe8] sm:$0xff]
        %v974 = vld [vmem:[%s345 + $0xf0] sm:$0xff]
        %v975 = vld [vmem:[%s345 + $0xf8] sm:$0xff]
        %v1008 = vunpack.c.l.b16 %v944
        %v1009 = vunpack.c.h.b16 %v944
        %v1010 = vunpack.c.l.b16 %v945
        %v1011 = vunpack.c.h.b16 %v945
        %v1012 = vunpack.c.l.b16 %v946
        %v1013 = vunpack.c.h.b16 %v946
        %v1014 = vunpack.c.l.b16 %v947
        %v1015 = vunpack.c.h.b16 %v947
        %v1016 = vunpack.c.l.b16 %v948
        %v1017 = vunpack.c.h.b16 %v948
        %v1018 = vunpack.c.l.b16 %v949
        %v1019 = vunpack.c.h.b16 %v949
        %v1020 = vunpack.c.l.b16 %v950
        %v1021 = vunpack.c.h.b16 %v950
        %v1022 = vunpack.c.l.b16 %v951
        %v1023 = vunpack.c.h.b16 %v951
        %v1024 = vunpack.c.l.b16 %v952
        %v1025 = vunpack.c.h.b16 %v952
        %v1026 = vunpack.c.l.b16 %v953
        %v1027 = vunpack.c.h.b16 %v953
        %v1028 = vunpack.c.l.b16 %v954
        %v1029 = vunpack.c.h.b16 %v954
        %v1030 = vunpack.c.l.b16 %v955
        %v1031 = vunpack.c.h.b16 %v955
        %v1032 = vunpack.c.l.b16 %v956
        %v1033 = vunpack.c.h.b16 %v956
        %v1034 = vunpack.c.l.b16 %v957
        %v1035 = vunpack.c.h.b16 %v957
        %v1036 = vunpack.c.l.b16 %v958
        %v1037 = vunpack.c.h.b16 %v958
        %v1038 = vunpack.c.l.b16 %v959
        %v1039 = vunpack.c.h.b16 %v959
        %v1040 = vunpack.c.l.b16 %v960
        %v1041 = vunpack.c.h.b16 %v960
        %v1042 = vunpack.c.l.b16 %v961
        %v1043 = vunpack.c.h.b16 %v961
        %v1044 = vunpack.c.l.b16 %v962
        %v1045 = vunpack.c.h.b16 %v962
        %v1046 = vunpack.c.l.b16 %v963
        %v1047 = vunpack.c.h.b16 %v963
        %v1048 = vunpack.c.l.b16 %v964
        %v1049 = vunpack.c.h.b16 %v964
        %v1050 = vunpack.c.l.b16 %v965
        %v1051 = vunpack.c.h.b16 %v965
        %v1052 = vunpack.c.l.b16 %v966
        %v1053 = vunpack.c.h.b16 %v966
        %v1054 = vunpack.c.l.b16 %v967
        %v1055 = vunpack.c.h.b16 %v967
        %v1056 = vunpack.c.l.b16 %v968
        %v1057 = vunpack.c.h.b16 %v968
        %v1058 = vunpack.c.l.b16 %v969
        %v1059 = vunpack.c.h.b16 %v969
        %v1060 = vunpack.c.l.b16 %v970
        %v1061 = vunpack.c.h.b16 %v970
        %v1062 = vunpack.c.l.b16 %v971
        %v1063 = vunpack.c.h.b16 %v971
        %v1064 = vunpack.c.l.b16 %v972
        %v1065 = vunpack.c.h.b16 %v972
        %v1066 = vunpack.c.l.b16 %v973
        %v1067 = vunpack.c.h.b16 %v973
        %v1068 = vunpack.c.l.b16 %v974
        %v1069 = vunpack.c.h.b16 %v974
        %v1070 = vunpack.c.l.b16 %v975
        %v1071 = vunpack.c.h.b16 %v975
        %v1072 = vpack.c.b16 %v1012, %v1008
        %v1073 = vpack.c.b16 %v1013, %v1009
        %v1074 = vpack.c.b16 %v1014, %v1010
        %v1075 = vpack.c.b16 %v1015, %v1011
        %v1076 = vpack.c.b16 %v1020, %v1016
        %v1077 = vpack.c.b16 %v1021, %v1017
        %v1078 = vpack.c.b16 %v1022, %v1018
        %v1079 = vpack.c.b16 %v1023, %v1019
        %v1080 = vpack.c.b16 %v1028, %v1024
        %v1081 = vpack.c.b16 %v1029, %v1025
        %v1082 = vpack.c.b16 %v1030, %v1026
        %v1083 = vpack.c.b16 %v1031, %v1027
        %v1084 = vpack.c.b16 %v1036, %v1032
        %v1085 = vpack.c.b16 %v1037, %v1033
        %v1086 = vpack.c.b16 %v1038, %v1034
        %v1087 = vpack.c.b16 %v1039, %v1035
        %v1088 = vpack.c.b16 %v1044, %v1040
        %v1089 = vpack.c.b16 %v1045, %v1041
        %v1090 = vpack.c.b16 %v1046, %v1042
        %v1091 = vpack.c.b16 %v1047, %v1043
        %v1092 = vpack.c.b16 %v1052, %v1048
        %v1093 = vpack.c.b16 %v1053, %v1049
        %v1094 = vpack.c.b16 %v1054, %v1050
        %v1095 = vpack.c.b16 %v1055, %v1051
        %v1096 = vpack.c.b16 %v1060, %v1056
        %v1097 = vpack.c.b16 %v1061, %v1057
        %v1098 = vpack.c.b16 %v1062, %v1058
        %v1099 = vpack.c.b16 %v1063, %v1059
        %v1100 = vpack.c.b16 %v1068, %v1064
        %v1101 = vpack.c.b16 %v1069, %v1065
        %v1102 = vpack.c.b16 %v1070, %v1066
        %v1103 = vpack.c.b16 %v1071, %v1067
        %1136 = vmatpush.bf16.msra.mxu0 %v1100
        %1137 = vmatpush.bf16.msra.mxu0 %v1096
        %1138 = vmatpush.bf16.msra.mxu0 %v1092
        %1139 = vmatpush.bf16.msra.mxu0 %v1088
        %1140 = vmatpush.bf16.msra.mxu0 %v1084
        %1141 = vmatpush.bf16.msra.mxu0 %v1080
        %1142 = vmatpush.bf16.msra.mxu0 %v1076
        %1143 = vmatpush.bf16.msra.mxu0 %v1072
        %1144 = vmatmul.bf16.gmra.mxu0 %v940
        %v1145 = vpop.f32.mrf.mxu0
        %v1146 = vadd.f32 0.0, %v1145
        %v1147 = vpop.f32.mrf.mxu0
        %v1148 = vadd.f32 0.0, %v1147
        %1149 = vmatmul.bf16.gmra.mxu0 %v941
        %v1150 = vpop.f32.mrf.mxu0
        %v1151 = vadd.f32 0.0, %v1150
        %v1152 = vpop.f32.mrf.mxu0
        %v1153 = vadd.f32 0.0, %v1152
        %1154 = vmatmul.bf16.gmra.mxu0 %v942
        %v1155 = vpop.f32.mrf.mxu0
        %v1156 = vadd.f32 0.0, %v1155
        %v1157 = vpop.f32.mrf.mxu0
        %v1158 = vadd.f32 0.0, %v1157
        %1159 = vmatmul.bf16.gmra.mxu0 %v943
        %v1160 = vpop.f32.mrf.mxu0
        %v1161 = vadd.f32 0.0, %v1160
        %v1162 = vpop.f32.mrf.mxu0
        %v1163 = vadd.f32 0.0, %v1162
        %1164 = vdwg.mxu0
        %1165 = vmatpush.bf16.msra.mxu0 %v1101
        %1166 = vmatpush.bf16.msra.mxu0 %v1097
        %1167 = vmatpush.bf16.msra.mxu0 %v1093
        %1168 = vmatpush.bf16.msra.mxu0 %v1089
        %1169 = vmatpush.bf16.msra.mxu0 %v1085
        %1170 = vmatpush.bf16.msra.mxu0 %v1081
        %1171 = vmatpush.bf16.msra.mxu0 %v1077
        %1172 = vmatpush.bf16.msra.mxu0 %v1073
        %1173 = vmatmul.bf16.gmra.mxu0 %v940
        %v1174 = vpop.f32.mrf.mxu0
        %v1175 = vadd.f32 0.0, %v1174
        %v1176 = vpop.f32.mrf.mxu0
        %v1177 = vadd.f32 0.0, %v1176
        %1178 = vmatmul.bf16.gmra.mxu0 %v941
        %v1179 = vpop.f32.mrf.mxu0
        %v1180 = vadd.f32 0.0, %v1179
        %v1181 = vpop.f32.mrf.mxu0
        %v1182 = vadd.f32 0.0, %v1181
        %1183 = vmatmul.bf16.gmra.mxu0 %v942
        %v1184 = vpop.f32.mrf.mxu0
        %v1185 = vadd.f32 0.0, %v1184
        %v1186 = vpop.f32.mrf.mxu0
        %v1187 = vadd.f32 0.0, %v1186
        %1188 = vmatmul.bf16.gmra.mxu0 %v943
        %v1189 = vpop.f32.mrf.mxu0
        %v1190 = vadd.f32 0.0, %v1189
        %v1191 = vpop.f32.mrf.mxu0
        %v1192 = vadd.f32 0.0, %v1191
        %1193 = vdwg.mxu0
        %1194 = vmatpush.bf16.msra.mxu0 %v1102
        %1195 = vmatpush.bf16.msra.mxu0 %v1098
        %1196 = vmatpush.bf16.msra.mxu0 %v1094
        %1197 = vmatpush.bf16.msra.mxu0 %v1090
        %1198 = vmatpush.bf16.msra.mxu0 %v1086
        %1199 = vmatpush.bf16.msra.mxu0 %v1082
        %1200 = vmatpush.bf16.msra.mxu0 %v1078
        %1201 = vmatpush.bf16.msra.mxu0 %v1074
        %1202 = vmatmul.bf16.gmra.mxu0 %v940
        %v1203 = vpop.f32.mrf.mxu0
        %v1204 = vadd.f32 0.0, %v1203
        %v1205 = vpop.f32.mrf.mxu0
        %v1206 = vadd.f32 0.0, %v1205
        %1207 = vmatmul.bf16.gmra.mxu0 %v941
        %v1208 = vpop.f32.mrf.mxu0
        %v1209 = vadd.f32 0.0, %v1208
        %v1210 = vpop.f32.mrf.mxu0
        %v1211 = vadd.f32 0.0, %v1210
        %1212 = vmatmul.bf16.gmra.mxu0 %v942
        %v1213 = vpop.f32.mrf.mxu0
        %v1214 = vadd.f32 0.0, %v1213
        %v1215 = vpop.f32.mrf.mxu0
        %v1216 = vadd.f32 0.0, %v1215
        %1217 = vmatmul.bf16.gmra.mxu0 %v943
        %v1218 = vpop.f32.mrf.mxu0
        %v1219 = vadd.f32 0.0, %v1218
        %v1220 = vpop.f32.mrf.mxu0
        %v1221 = vadd.f32 0.0, %v1220
        %1222 = vdwg.mxu0
        %1223 = vmatpush.bf16.msra.mxu0 %v1103
        %1224 = vmatpush.bf16.msra.mxu0 %v1099
        %1225 = vmatpush.bf16.msra.mxu0 %v1095
        %1226 = vmatpush.bf16.msra.mxu0 %v1091
        %1227 = vmatpush.bf16.msra.mxu0 %v1087
        %1228 = vmatpush.bf16.msra.mxu0 %v1083
        %1229 = vmatpush.bf16.msra.mxu0 %v1079
        %1230 = vmatpush.bf16.msra.mxu0 %v1075
        %1231 = vmatmul.bf16.gmra.mxu0 %v940
        %v1232 = vpop.f32.mrf.mxu0
        %v1233 = vadd.f32 0.0, %v1232
        %v1234 = vpop.f32.mrf.mxu0
        %v1235 = vadd.f32 0.0, %v1234
        %1236 = vmatmul.bf16.gmra.mxu0 %v941
        %v1237 = vpop.f32.mrf.mxu0
        %v1238 = vadd.f32 0.0, %v1237
        %v1239 = vpop.f32.mrf.mxu0
        %v1240 = vadd.f32 0.0, %v1239
        %1241 = vmatmul.bf16.gmra.mxu0 %v942
        %v1242 = vpop.f32.mrf.mxu0
        %v1243 = vadd.f32 0.0, %v1242
        %v1244 = vpop.f32.mrf.mxu0
        %v1245 = vadd.f32 0.0, %v1244
        %1246 = vmatmul.bf16.gmra.mxu0 %v943
        %v1247 = vpop.f32.mrf.mxu0
        %v1248 = vadd.f32 0.0, %v1247
        %v1249 = vpop.f32.mrf.mxu0
        %v1250 = vadd.f32 0.0, %v1249
        %1251 = vdwg.mxu0
        %p1252 = scmp.eq.s32.totalorder %s25, 0
        // Predicated region
        $region65: #{tpu_custom_call.1} parent=43 // pred_check
          %p1253 = pneg %p1252
        $region66: #{tpu_custom_call.1} parent=43 // pred_check_branch
          %1255 = sbr.rel (%p1253) target = $region68
        $region67: #{tpu_custom_call.1} parent=43 // pred_region
          %1256 = vst [vmem:[#allocation11] sm:$0xff] %v1146
          %1257 = vst [vmem:[#allocation11 + $0x8] sm:$0xff] %v1175
          %1258 = vst [vmem:[#allocation11 + $0x10] sm:$0xff] %v1204
          %1259 = vst [vmem:[#allocation11 + $0x18] sm:$0xff] %v1233
          %1260 = vst [vmem:[#allocation11 + $0x20] sm:$0xff] %v1148
          %1261 = vst [vmem:[#allocation11 + $0x28] sm:$0xff] %v1177
          %1262 = vst [vmem:[#allocation11 + $0x30] sm:$0xff] %v1206
          %1263 = vst [vmem:[#allocation11 + $0x38] sm:$0xff] %v1235
          %1264 = vst [vmem:[#allocation11 + $0x40] sm:$0xff] %v1151
          %1265 = vst [vmem:[#allocation11 + $0x48] sm:$0xff] %v1180
          %1266 = vst [vmem:[#allocation11 + $0x50] sm:$0xff] %v1209
          %1267 = vst [vmem:[#allocation11 + $0x58] sm:$0xff] %v1238
          %1268 = vst [vmem:[#allocation11 + $0x60] sm:$0xff] %v1153
          %1269 = vst [vmem:[#allocation11 + $0x68] sm:$0xff] %v1182
          %1270 = vst [vmem:[#allocation11 + $0x70] sm:$0xff] %v1211
          %1271 = vst [vmem:[#allocation11 + $0x78] sm:$0xff] %v1240
          %1272 = vst [vmem:[#allocation11 + $0x80] sm:$0xff] %v1156
          %1273 = vst [vmem:[#allocation11 + $0x88] sm:$0xff] %v1185
          %1274 = vst [vmem:[#allocation11 + $0x90] sm:$0xff] %v1214
          %1275 = vst [vmem:[#allocation11 + $0x98] sm:$0xff] %v1243
          %1276 = vst [vmem:[#allocation11 + $0xa0] sm:$0xff] %v1158
          %1277 = vst [vmem:[#allocation11 + $0xa8] sm:$0xff] %v1187
          %1278 = vst [vmem:[#allocation11 + $0xb0] sm:$0xff] %v1216
          %1279 = vst [vmem:[#allocation11 + $0xb8] sm:$0xff] %v1245
          %1280 = vst [vmem:[#allocation11 + $0xc0] sm:$0xff] %v1161
          %1281 = vst [vmem:[#allocation11 + $0xc8] sm:$0xff] %v1190
          %1282 = vst [vmem:[#allocation11 + $0xd0] sm:$0xff] %v1219
          %1283 = vst [vmem:[#allocation11 + $0xd8] sm:$0xff] %v1248
          %1284 = vst [vmem:[#allocation11 + $0xe0] sm:$0xff] %v1163
          %1285 = vst [vmem:[#allocation11 + $0xe8] sm:$0xff] %v1192
          %1286 = vst [vmem:[#allocation11 + $0xf0] sm:$0xff] %v1221
          %1287 = vst [vmem:[#allocation11 + $0xf8] sm:$0xff] %v1250
        $region68: #{tpu_custom_call.1} parent=43 // pred_fallthru
          _
        %p1288 = scmp.gt.s32.totalorder %s25, 0
        // Predicated region
        $region69: #{tpu_custom_call.1} parent=43 // pred_check
          %p1289 = pneg %p1288
        $region70: #{tpu_custom_call.1} parent=43 // pred_check_branch
          %1291 = sbr.rel (%p1289) target = $region72
        $region71: #{tpu_custom_call.1} parent=43 // pred_region
          %v1292 = vld [vmem:[#allocation11] sm:$0xff]
          %v1293 = vld [vmem:[#allocation11 + $0x8] sm:$0xff]
          %v1294 = vld [vmem:[#allocation11 + $0x10] sm:$0xff]
          %v1295 = vld [vmem:[#allocation11 + $0x18] sm:$0xff]
          %v1296 = vld [vmem:[#allocation11 + $0x20] sm:$0xff]
          %v1297 = vld [vmem:[#allocation11 + $0x28] sm:$0xff]
          %v1298 = vld [vmem:[#allocation11 + $0x30] sm:$0xff]
          %v1299 = vld [vmem:[#allocation11 + $0x38] sm:$0xff]
          %v1300 = vld [vmem:[#allocation11 + $0x40] sm:$0xff]
          %v1301 = vld [vmem:[#allocation11 + $0x48] sm:$0xff]
          %v1302 = vld [vmem:[#allocation11 + $0x50] sm:$0xff]
          %v1303 = vld [vmem:[#allocation11 + $0x58] sm:$0xff]
          %v1304 = vld [vmem:[#allocation11 + $0x60] sm:$0xff]
          %v1305 = vld [vmem:[#allocation11 + $0x68] sm:$0xff]
          %v1306 = vld [vmem:[#allocation11 + $0x70] sm:$0xff]
          %v1307 = vld [vmem:[#allocation11 + $0x78] sm:$0xff]
          %v1308 = vld [vmem:[#allocation11 + $0x80] sm:$0xff]
          %v1309 = vld [vmem:[#allocation11 + $0x88] sm:$0xff]
          %v1310 = vld [vmem:[#allocation11 + $0x90] sm:$0xff]
          %v1311 = vld [vmem:[#allocation11 + $0x98] sm:$0xff]
          %v1312 = vld [vmem:[#allocation11 + $0xa0] sm:$0xff]
          %v1313 = vld [vmem:[#allocation11 + $0xa8] sm:$0xff]
          %v1314 = vld [vmem:[#allocation11 + $0xb0] sm:$0xff]
          %v1315 = vld [vmem:[#allocation11 + $0xb8] sm:$0xff]
          %v1316 = vld [vmem:[#allocation11 + $0xc0] sm:$0xff]
          %v1317 = vld [vmem:[#allocation11 + $0xc8] sm:$0xff]
          %v1318 = vld [vmem:[#allocation11 + $0xd0] sm:$0xff]
          %v1319 = vld [vmem:[#allocation11 + $0xd8] sm:$0xff]
          %v1320 = vld [vmem:[#allocation11 + $0xe0] sm:$0xff]
          %v1321 = vld [vmem:[#allocation11 + $0xe8] sm:$0xff]
          %v1322 = vld [vmem:[#allocation11 + $0xf0] sm:$0xff]
          %v1323 = vld [vmem:[#allocation11 + $0xf8] sm:$0xff]
          %v1324 = vadd.f32 %v1292, %v1146
          %v1325 = vadd.f32 %v1293, %v1175
          %v1326 = vadd.f32 %v1294, %v1204
          %v1327 = vadd.f32 %v1295, %v1233
          %v1328 = vadd.f32 %v1296, %v1148
          %v1329 = vadd.f32 %v1297, %v1177
          %v1330 = vadd.f32 %v1298, %v1206
          %v1331 = vadd.f32 %v1299, %v1235
          %v1332 = vadd.f32 %v1300, %v1151
          %v1333 = vadd.f32 %v1301, %v1180
          %v1334 = vadd.f32 %v1302, %v1209
          %v1335 = vadd.f32 %v1303, %v1238
          %v1336 = vadd.f32 %v1304, %v1153
          %v1337 = vadd.f32 %v1305, %v1182
          %v1338 = vadd.f32 %v1306, %v1211
          %v1339 = vadd.f32 %v1307, %v1240
          %v1340 = vadd.f32 %v1308, %v1156
          %v1341 = vadd.f32 %v1309, %v1185
          %v1342 = vadd.f32 %v1310, %v1214
          %v1343 = vadd.f32 %v1311, %v1243
          %v1344 = vadd.f32 %v1312, %v1158
          %v1345 = vadd.f32 %v1313, %v1187
          %v1346 = vadd.f32 %v1314, %v1216
          %v1347 = vadd.f32 %v1315, %v1245
          %v1348 = vadd.f32 %v1316, %v1161
          %v1349 = vadd.f32 %v1317, %v1190
          %v1350 = vadd.f32 %v1318, %v1219
          %v1351 = vadd.f32 %v1319, %v1248
          %v1352 = vadd.f32 %v1320, %v1163
          %v1353 = vadd.f32 %v1321, %v1192
          %v1354 = vadd.f32 %v1322, %v1221
          %v1355 = vadd.f32 %v1323, %v1250
          %1356 = vst [vmem:[#allocation11] sm:$0xff] %v1324
          %1357 = vst [vmem:[#allocation11 + $0x8] sm:$0xff] %v1325
          %1358 = vst [vmem:[#allocation11 + $0x10] sm:$0xff] %v1326
          %1359 = vst [vmem:[#allocation11 + $0x18] sm:$0xff] %v1327
          %1360 = vst [vmem:[#allocation11 + $0x20] sm:$0xff] %v1328
          %1361 = vst [vmem:[#allocation11 + $0x28] sm:$0xff] %v1329
          %1362 = vst [vmem:[#allocation11 + $0x30] sm:$0xff] %v1330
          %1363 = vst [vmem:[#allocation11 + $0x38] sm:$0xff] %v1331
          %1364 = vst [vmem:[#allocation11 + $0x40] sm:$0xff] %v1332
          %1365 = vst [vmem:[#allocation11 + $0x48] sm:$0xff] %v1333
          %1366 = vst [vmem:[#allocation11 + $0x50] sm:$0xff] %v1334
          %1367 = vst [vmem:[#allocation11 + $0x58] sm:$0xff] %v1335
          %1368 = vst [vmem:[#allocation11 + $0x60] sm:$0xff] %v1336
          %1369 = vst [vmem:[#allocation11 + $0x68] sm:$0xff] %v1337
          %1370 = vst [vmem:[#allocation11 + $0x70] sm:$0xff] %v1338
          %1371 = vst [vmem:[#allocation11 + $0x78] sm:$0xff] %v1339
          %1372 = vst [vmem:[#allocation11 + $0x80] sm:$0xff] %v1340
          %1373 = vst [vmem:[#allocation11 + $0x88] sm:$0xff] %v1341
          %1374 = vst [vmem:[#allocation11 + $0x90] sm:$0xff] %v1342
          %1375 = vst [vmem:[#allocation11 + $0x98] sm:$0xff] %v1343
          %1376 = vst [vmem:[#allocation11 + $0xa0] sm:$0xff] %v1344
          %1377 = vst [vmem:[#allocation11 + $0xa8] sm:$0xff] %v1345
          %1378 = vst [vmem:[#allocation11 + $0xb0] sm:$0xff] %v1346
          %1379 = vst [vmem:[#allocation11 + $0xb8] sm:$0xff] %v1347
          %1380 = vst [vmem:[#allocation11 + $0xc0] sm:$0xff] %v1348
          %1381 = vst [vmem:[#allocation11 + $0xc8] sm:$0xff] %v1349
          %1382 = vst [vmem:[#allocation11 + $0xd0] sm:$0xff] %v1350
          %1383 = vst [vmem:[#allocation11 + $0xd8] sm:$0xff] %v1351
          %1384 = vst [vmem:[#allocation11 + $0xe0] sm:$0xff] %v1352
          %1385 = vst [vmem:[#allocation11 + $0xe8] sm:$0xff] %v1353
          %1386 = vst [vmem:[#allocation11 + $0xf0] sm:$0xff] %v1354
          %1387 = vst [vmem:[#allocation11 + $0xf8] sm:$0xff] %v1355
        $region72: #{tpu_custom_call.1} parent=43 // pred_fallthru
          _
        %p1388 = scmp.eq.s32.totalorder %s25, 1
        // Predicated region
        $region73: #{tpu_custom_call.1} parent=43 // pred_check
          %p1389 = pneg %p1388
        $region74: #{tpu_custom_call.1} parent=43 // pred_check_branch
          %1391 = sbr.rel (%p1389) target = $region76
        $region75: #{tpu_custom_call.1} parent=43 // pred_region
          %v1392 = vld [vmem:[#allocation11] sm:$0xff]
          %v1393 = vld [vmem:[#allocation11 + $0x8] sm:$0xff]
          %v1394 = vld [vmem:[#allocation11 + $0x10] sm:$0xff]
          %v1395 = vld [vmem:[#allocation11 + $0x18] sm:$0xff]
          %v1396 = vld [vmem:[#allocation11 + $0x20] sm:$0xff]
          %v1397 = vld [vmem:[#allocation11 + $0x28] sm:$0xff]
          %v1398 = vld [vmem:[#allocation11 + $0x30] sm:$0xff]
          %v1399 = vld [vmem:[#allocation11 + $0x38] sm:$0xff]
          %v1400 = vld [vmem:[#allocation11 + $0x40] sm:$0xff]
          %v1401 = vld [vmem:[#allocation11 + $0x48] sm:$0xff]
          %v1402 = vld [vmem:[#allocation11 + $0x50] sm:$0xff]
          %v1403 = vld [vmem:[#allocation11 + $0x58] sm:$0xff]
          %v1404 = vld [vmem:[#allocation11 + $0x60] sm:$0xff]
          %v1405 = vld [vmem:[#allocation11 + $0x68] sm:$0xff]
          %v1406 = vld [vmem:[#allocation11 + $0x70] sm:$0xff]
          %v1407 = vld [vmem:[#allocation11 + $0x78] sm:$0xff]
          %v1408 = vld [vmem:[#allocation11 + $0x80] sm:$0xff]
          %v1409 = vld [vmem:[#allocation11 + $0x88] sm:$0xff]
          %v1410 = vld [vmem:[#allocation11 + $0x90] sm:$0xff]
          %v1411 = vld [vmem:[#allocation11 + $0x98] sm:$0xff]
          %v1412 = vld [vmem:[#allocation11 + $0xa0] sm:$0xff]
          %v1413 = vld [vmem:[#allocation11 + $0xa8] sm:$0xff]
          %v1414 = vld [vmem:[#allocation11 + $0xb0] sm:$0xff]
          %v1415 = vld [vmem:[#allocation11 + $0xb8] sm:$0xff]
          %v1416 = vld [vmem:[#allocation11 + $0xc0] sm:$0xff]
          %v1417 = vld [vmem:[#allocation11 + $0xc8] sm:$0xff]
          %v1418 = vld [vmem:[#allocation11 + $0xd0] sm:$0xff]
          %v1419 = vld [vmem:[#allocation11 + $0xd8] sm:$0xff]
          %v1420 = vld [vmem:[#allocation11 + $0xe0] sm:$0xff]
          %v1421 = vld [vmem:[#allocation11 + $0xe8] sm:$0xff]
          %v1422 = vld [vmem:[#allocation11 + $0xf0] sm:$0xff]
          %v1423 = vld [vmem:[#allocation11 + $0xf8] sm:$0xff]
          %v1424 = vld [vmem:[%s5] sm:$0xf]
          %v1426 = vperm.slane %v1424, 0
          %v1427 = vperm.slane %v1424, 1
          %v1428 = vperm.slane %v1424, 2
          %v1429 = vperm.slane %v1424, 3
          %v1434 = vadd.f32 %v1392, %v1426
          %v1435 = vadd.f32 %v1393, %v1427
          %v1436 = vadd.f32 %v1394, %v1428
          %v1437 = vadd.f32 %v1395, %v1429
          %v1438 = vadd.f32 %v1396, %v1426
          %v1439 = vadd.f32 %v1397, %v1427
          %v1440 = vadd.f32 %v1398, %v1428
          %v1441 = vadd.f32 %v1399, %v1429
          %v1442 = vadd.f32 %v1400, %v1426
          %v1443 = vadd.f32 %v1401, %v1427
          %v1444 = vadd.f32 %v1402, %v1428
          %v1445 = vadd.f32 %v1403, %v1429
          %v1446 = vadd.f32 %v1404, %v1426
          %v1447 = vadd.f32 %v1405, %v1427
          %v1448 = vadd.f32 %v1406, %v1428
          %v1449 = vadd.f32 %v1407, %v1429
          %v1450 = vadd.f32 %v1408, %v1426
          %v1451 = vadd.f32 %v1409, %v1427
          %v1452 = vadd.f32 %v1410, %v1428
          %v1453 = vadd.f32 %v1411, %v1429
          %v1454 = vadd.f32 %v1412, %v1426
          %v1455 = vadd.f32 %v1413, %v1427
          %v1456 = vadd.f32 %v1414, %v1428
          %v1457 = vadd.f32 %v1415, %v1429
          %v1458 = vadd.f32 %v1416, %v1426
          %v1459 = vadd.f32 %v1417, %v1427
          %v1460 = vadd.f32 %v1418, %v1428
          %v1461 = vadd.f32 %v1419, %v1429
          %v1462 = vadd.f32 %v1420, %v1426
          %v1463 = vadd.f32 %v1421, %v1427
          %v1464 = vadd.f32 %v1422, %v1428
          %v1465 = vadd.f32 %v1423, %v1429
          %1466 = vst [vmem:[#allocation11] sm:$0xff] %v1434
          %1467 = vst [vmem:[#allocation11 + $0x8] sm:$0xff] %v1435
          %1468 = vst [vmem:[#allocation11 + $0x10] sm:$0xff] %v1436
          %1469 = vst [vmem:[#allocation11 + $0x18] sm:$0xff] %v1437
          %1470 = vst [vmem:[#allocation11 + $0x20] sm:$0xff] %v1438
          %1471 = vst [vmem:[#allocation11 + $0x28] sm:$0xff] %v1439
          %1472 = vst [vmem:[#allocation11 + $0x30] sm:$0xff] %v1440
          %1473 = vst [vmem:[#allocation11 + $0x38] sm:$0xff] %v1441
          %1474 = vst [vmem:[#allocation11 + $0x40] sm:$0xff] %v1442
          %1475 = vst [vmem:[#allocation11 + $0x48] sm:$0xff] %v1443
          %1476 = vst [vmem:[#allocation11 + $0x50] sm:$0xff] %v1444
          %1477 = vst [vmem:[#allocation11 + $0x58] sm:$0xff] %v1445
          %1478 = vst [vmem:[#allocation11 + $0x60] sm:$0xff] %v1446
          %1479 = vst [vmem:[#allocation11 + $0x68] sm:$0xff] %v1447
          %1480 = vst [vmem:[#allocation11 + $0x70] sm:$0xff] %v1448
          %1481 = vst [vmem:[#allocation11 + $0x78] sm:$0xff] %v1449
          %1482 = vst [vmem:[#allocation11 + $0x80] sm:$0xff] %v1450
          %1483 = vst [vmem:[#allocation11 + $0x88] sm:$0xff] %v1451
          %1484 = vst [vmem:[#allocation11 + $0x90] sm:$0xff] %v1452
          %1485 = vst [vmem:[#allocation11 + $0x98] sm:$0xff] %v1453
          %1486 = vst [vmem:[#allocation11 + $0xa0] sm:$0xff] %v1454
          %1487 = vst [vmem:[#allocation11 + $0xa8] sm:$0xff] %v1455
          %1488 = vst [vmem:[#allocation11 + $0xb0] sm:$0xff] %v1456
          %1489 = vst [vmem:[#allocation11 + $0xb8] sm:$0xff] %v1457
          %1490 = vst [vmem:[#allocation11 + $0xc0] sm:$0xff] %v1458
          %1491 = vst [vmem:[#allocation11 + $0xc8] sm:$0xff] %v1459
          %1492 = vst [vmem:[#allocation11 + $0xd0] sm:$0xff] %v1460
          %1493 = vst [vmem:[#allocation11 + $0xd8] sm:$0xff] %v1461
          %1494 = vst [vmem:[#allocation11 + $0xe0] sm:$0xff] %v1462
          %1495 = vst [vmem:[#allocation11 + $0xe8] sm:$0xff] %v1463
          %1496 = vst [vmem:[#allocation11 + $0xf0] sm:$0xff] %v1464
          %1497 = vst [vmem:[#allocation11 + $0xf8] sm:$0xff] %v1465
        $region76: #{tpu_custom_call.1} parent=43 // pred_fallthru
          _
        // Predicated region
        $region77: #{tpu_custom_call.1} parent=43 // pred_check
          %p1498 = pneg %p184
        $region78: #{tpu_custom_call.1} parent=43 // pred_check_branch
          %1500 = sbr.rel (%p1498) target = $region80
        $region79: #{tpu_custom_call.1} parent=43 // pred_region
          %1502 = vsyncadd [#allocation4], 0
          %s1503 = sshll.u32 [#allocation11], 4
          %s1504 = int_to_ptr.vmem [resolvable:$true] %s1503
          %s1505 = sshll.u32 %s6, 4
          %s1506 = int_to_ptr.hbm [resolvable:$true] %s1505
          %1511 = dma.vmem_to_hbm [thread:$0]  %s1504, 4096, %s1506, [#allocation4], 512, 512, 32
        $region80: #{tpu_custom_call.1} parent=43 // pred_fallthru
          _
        // Predicated region
        $region81: #{tpu_custom_call.1} parent=43 // pred_check
          %p1512 = pneg %p184
        $region82: #{tpu_custom_call.1} parent=43 // pred_check_branch
          %1514 = sbr.rel (%p1512) target = $region84
        $region83: #{tpu_custom_call.1} parent=43 // pred_region
          %1516 = dma.done [#allocation4], 4096
        $region84: #{tpu_custom_call.1} parent=43 // pred_fallthru
          _
      $region44: #{tpu_custom_call.1} parent=5 // pred_fallthru
        _
      %p1517 = scmp.le.s32.totalorder 2, %s20
      // Predicated region
      $region85: #{tpu_custom_call.1} parent=5 // pred_check
        %p1518 = pneg %p1517
      $region86: #{tpu_custom_call.1} parent=5 // pred_check_branch
        %1520 = sbr.rel (%p1518) target = $region88
      $region87: #{tpu_custom_call.1} parent=5 // pred_region
        %s1521 = ssub.s32 %s20, 2
      $region88: #{tpu_custom_call.1} parent=5 // pred_fallthru
        _
    $region6: #{tpu_custom_call.1} parent=1 // loop_footer
      %s24 = sadd.s32 1, %s20
    $region7: #{tpu_custom_call.1} parent=1 // loop_footer_branch
      %19 = sbr.rel target = $region3
    $region8: #{tpu_custom_call.1} parent=1 // loop_exit
      _
    %1522 = vsyncpa [#allocation3], 1
    %s1523 = scalar_lea.sflag [#allocation3], 1
    %1524 = vsyncpa %s1523, 1
    %1525 = vsyncpa [#allocation6], 1
    %s1526 = scalar_lea.sflag [#allocation6], 1
    %1527 = vsyncpa %s1526, 1
    %1528 = vsyncpa [#allocation9], 1
    %s1529 = scalar_lea.sflag [#allocation9], 1
    %1530 = vsyncpa %s1529, 1
    %1531 = vsyncpa [#allocation4], 1
    %s1532 = scalar_lea.sflag [#allocation4], 1
    %1533 = vsyncpa %s1532, 1

</llo_original>
